<compile_context>
chip_gen: v7x
topology: tpu7x:2x2x1
jax: 0.10.0
libtpu: 0.0.40
codegen_flags: <defaults>
</compile_context>

<pallas_src>
import functools

import jax
import jax.numpy as jnp
from jax.experimental import pallas as pl
from jax.experimental.pallas import tpu as pltpu


def _round_up(x, m):
    return ((x + m - 1) // m) * m


def gated_attn_kernel(x_ref, wab_ref, bab_ref, wc_ref, bc_ref, out_ref, *, gate_dtype):
    hp = wab_ref.shape[1] // 2                        # padded hidden (static)
    c = out_ref.shape[-1]                             # real n_classes (static)

    # In-kernel cast to the MXU operand dtype (no extra HBM pass in the wrapper).
    x = x_ref[...].astype(wab_ref.dtype)              # (tm, D)

    # Fused gate projections: ONE MXU pass produces both pre-activations, f32 acc.
    pre = (jnp.dot(x, wab_ref[...], preferred_element_type=jnp.float32)
           + bab_ref[...])                            # (tm, 2*Hp) f32

    # Gate nonlinearities (EUP).  Slices land on 128-lane boundaries (Hp % 128 == 0).
    xa = pre[:, :hp].astype(gate_dtype)
    xb = pre[:, hp:].astype(gate_dtype)
    a = jnp.tanh(xa)                                  # (tm, Hp)
    b = 1.0 / (1.0 + jnp.exp(-xb))                    # sigmoid, (tm, Hp)
    gated = (a * b).astype(wc_ref.dtype)              # (tm, Hp)  (VPU)

    # attention_c against a lane-aligned padded weight; store ONLY the real columns.
    out = (jnp.dot(gated, wc_ref[...], preferred_element_type=jnp.float32)
           + bc_ref[...])                             # (tm, Cp) f32
    out_ref[...] = out[:, :c].astype(out_ref.dtype)   # (tm, C)


def prepare_params(wa, ba, wb, bb, wc, bc, mxu_dtype=None):
    """One-time weight preparation (transpose, fuse, pad).

    wa, wb: (H, D) PyTorch Linear weights; ba, bb: (H,); wc: (C, H); bc: (C,).
    mxu_dtype: optional narrower dtype (e.g. jnp.bfloat16) for the MXU operands;
    fine on every TPU generation (MXU is bf16-native), accumulation stays f32.
    """
    H, D = wa.shape
    C = wc.shape[0]
    Hp = _round_up(H, 128)                            # lane-aligned gate half width
    Cp = _round_up(max(C, 128), 128)                  # lane-aligned matmul width
    w_dtype = wa.dtype if mxu_dtype is None else mxu_dtype

    w_ab = jnp.zeros((D, 2 * Hp), w_dtype)
    w_ab = w_ab.at[:, :H].set(wa.T.astype(w_dtype))
    w_ab = w_ab.at[:, Hp:Hp + H].set(wb.T.astype(w_dtype))
    b_ab = jnp.zeros((1, 2 * Hp), jnp.float32)
    b_ab = b_ab.at[:, :H].set(ba.astype(jnp.float32))
    b_ab = b_ab.at[:, Hp:Hp + H].set(bb.astype(jnp.float32))
    # Padded rows of w_c are zero, so padded gate columns (tanh(0)*sigmoid(0)=0 anyway)
    # contribute nothing; padded output columns are never stored.
    w_c = jnp.zeros((Hp, Cp), w_dtype).at[:H, :C].set(wc.T.astype(w_dtype))
    b_c = jnp.zeros((1, Cp), jnp.float32).at[:, :C].set(bc.astype(jnp.float32))

    return {"w_ab": w_ab, "b_ab": b_ab, "w_c": w_c, "b_c": b_c,
            "input_dim": D, "hidden_dim": H, "n_classes": C}


def attention_net_gated(x, params, *, tm=256, gate_dtype=jnp.float32):
    """x: (N, input_dim). params from prepare_params(). Returns (A, x)."""
    w_ab, b_ab = params["w_ab"], params["b_ab"]
    w_c, b_c = params["w_c"], params["b_c"]
    N, D = x.shape
    H2p = w_ab.shape[1]
    Hp = H2p // 2
    Cp = w_c.shape[1]
    C = params["n_classes"]

    # Row tile: multiple of 128 (MXU fill + bf16 sublane packing), capped by N.
    tm_eff = max(128, min(_round_up(tm, 128), _round_up(N, 128)))
    # Prefer >= 4 grid steps (>= 2 per v7x TensorCore) so the x pipeline overlaps.
    while tm_eff > 128 and pl.cdiv(N, tm_eff) < 4:
        tm_eff -= 128
    grid = (pl.cdiv(N, tm_eff),)                      # ragged last tile is masked

    kernel = functools.partial(gated_attn_kernel, gate_dtype=gate_dtype)

    A = pl.pallas_call(
        kernel,
        out_shape=jax.ShapeDtypeStruct((N, C), x.dtype),
        grid_spec=pltpu.PrefetchScalarGridSpec(
            num_scalar_prefetch=0,
            grid=grid,
            in_specs=[
                pl.BlockSpec((tm_eff, D), lambda i: (i, 0)),   # x row tile
                pl.BlockSpec((D, H2p), lambda i: (0, 0)),      # [Wa^T | Wb^T] resident
                pl.BlockSpec((1, H2p), lambda i: (0, 0)),      # [ba | bb]
                pl.BlockSpec((Hp, Cp), lambda i: (0, 0)),      # Wc^T (padded)
                pl.BlockSpec((1, Cp), lambda i: (0, 0)),       # bc (padded)
            ],
            out_specs=pl.BlockSpec((tm_eff, C), lambda i: (i, 0)),
        ),
        compiler_params=pltpu.CompilerParams(
            dimension_semantics=("parallel",)),
    )(x, w_ab, b_ab, w_c, b_c)

    return A, x


def _init_linear(key, out_dim, in_dim, dtype=jnp.float32):
    # Deterministic init matching nn.Linear's U(-1/sqrt(in), 1/sqrt(in)).
    k_w, k_b = jax.random.split(key)
    bound = 1.0 / jnp.sqrt(jnp.array(in_dim, dtype))
    w = jax.random.uniform(k_w, (out_dim, in_dim), dtype, -bound, bound)
    b = jax.random.uniform(k_b, (out_dim,), dtype, -bound, bound)
    return w, b


if __name__ == "__main__":
    key = jax.random.PRNGKey(0)
    k_x, k_a, k_b, k_c = jax.random.split(key, 4)

    # Module defaults: input_dim=256, hidden_dim=256, n_classes=1.
    # N = 1000 patch tokens: not a tile multiple (exercises the ragged last block)
    # and gives 4 grid steps (>= 2 per v7x TensorCore).
    N, input_dim, hidden_dim, n_classes = 1000, 256, 256, 1

    x = jax.random.normal(k_x, (N, input_dim), jnp.float32)
    wa, ba = _init_linear(k_a, hidden_dim, input_dim)   # attention_a Linear
    wb, bb = _init_linear(k_b, hidden_dim, input_dim)   # attention_b Linear
    wc, bc = _init_linear(k_c, n_classes, hidden_dim)   # attention_c Linear

    # Pure-JAX reference (eval-mode forward, matches the PyTorch module).
    hi = jax.lax.Precision.HIGHEST
    a_ref = jnp.tanh(jnp.dot(x, wa.T, precision=hi) + ba)
    b_ref = jax.nn.sigmoid(jnp.dot(x, wb.T, precision=hi) + bb)
    A_ref = jnp.dot(a_ref * b_ref, wc.T, precision=hi) + bc

    # 1) f32 MXU operands: parity path.
    params = prepare_params(wa, ba, wb, bb, wc, bc)
    A, x_out = attention_net_gated(x, params, tm=256)
    A = jax.block_until_ready(A)
    assert A.shape == (N, n_classes)
    assert x_out is x                                   # x passthrough, no copy
    assert jnp.allclose(A, A_ref, atol=1e-4, rtol=1e-4), \
        float(jnp.max(jnp.abs(A - A_ref)))

    # 2) bf16 MXU operands (all generations -- MXU is bf16-native), f32 gates & acc.
    params_bf16 = prepare_params(wa, ba, wb, bb, wc, bc, mxu_dtype=jnp.bfloat16)
    A16, _ = attention_net_gated(x, params_bf16, tm=256)
    A16 = jax.block_until_ready(A16)
    assert jnp.allclose(A16, A_ref, atol=3e-2, rtol=3e-2)

    # 3) bf16 gate nonlinearities on chips with a bf16 EUP/VPU path (v6e / v7x).
    kind = jax.devices()[0].device_kind.lower()
    if ("v6" in kind) or ("v7" in kind) or ("7x" in kind):
        A16g, _ = attention_net_gated(x, params_bf16, tm=256, gate_dtype=jnp.bfloat16)
        A16g = jax.block_until_ready(A16g)
        assert jnp.allclose(A16g, A_ref, atol=5e-2, rtol=5e-2)

    print("KERNEL_OK")
</pallas_src>

<mosaic_0001>
module attributes {stable_mosaic.version = 11 : i64} {
  func.func @gated_attn_kernel(%arg0: i32, %arg1: memref<256x256xf32, #tpu.memory_space<vmem>>, %arg2: memref<256x512xf32, #tpu.memory_space<vmem>>, %arg3: memref<1x512xf32, #tpu.memory_space<vmem>>, %arg4: memref<256x128xf32, #tpu.memory_space<vmem>>, %arg5: memref<1x128xf32, #tpu.memory_space<vmem>>, %arg6: memref<256x1xf32, #tpu.memory_space<vmem>>) attributes {dimension_semantics = [#tpu.dimension_semantics<parallel>], iteration_bounds = array<i64: 4>, scalar_prefetch = 0 : i64, scratch_operands = 0 : i64, tpu.core_type = #tpu.core_type<tc>, window_params = [{transform_indices = @transform_0, window_bounds = array<i64: 256, 256>}, {pipeline_mode = #tpu.pipeline_mode<synchronous>, transform_indices = @transform_1, window_bounds = array<i64: 256, 512>}, {pipeline_mode = #tpu.pipeline_mode<synchronous>, transform_indices = @transform_2, window_bounds = array<i64: 1, 512>}, {pipeline_mode = #tpu.pipeline_mode<synchronous>, transform_indices = @transform_3, window_bounds = array<i64: 256, 128>}, {pipeline_mode = #tpu.pipeline_mode<synchronous>, transform_indices = @transform_4, window_bounds = array<i64: 1, 128>}, {transform_indices = @transform_5, window_bounds = array<i64: 256, 1>}]} {
    %c0 = arith.constant 0 : index
    %c0_0 = arith.constant 0 : index
    %0 = vector.load %arg1[%c0, %c0_0] : memref<256x256xf32, #tpu.memory_space<vmem>>, vector<256x256xf32>
    %c0_1 = arith.constant 0 : index
    %c0_2 = arith.constant 0 : index
    %1 = vector.load %arg2[%c0_1, %c0_2] : memref<256x512xf32, #tpu.memory_space<vmem>>, vector<256x512xf32>
    %cst = arith.constant dense<0.000000e+00> : vector<256x512xf32>
    %2 = tpu.matmul %0, %1, %cst {dimension_numbers = #tpu.dot_dimension_numbers<[1], [0], [0], [1], [0, 0, 1, 1], [], []>} : vector<256x256xf32>, vector<256x512xf32>, vector<256x512xf32> -> vector<256x512xf32>
    %c0_3 = arith.constant 0 : index
    %c0_4 = arith.constant 0 : index
    %3 = vector.load %arg3[%c0_3, %c0_4] : memref<1x512xf32, #tpu.memory_space<vmem>>, vector<1x512xf32>
    %4 = vector.broadcast %3 : vector<1x512xf32> to vector<256x512xf32>
    %5 = arith.addf %2, %4 : vector<256x512xf32>
    %6 = vector.extract_strided_slice %5 {offsets = [0, 0], sizes = [256, 256], strides = [1, 1]} : vector<256x512xf32> to vector<256x256xf32>
    %7 = vector.extract_strided_slice %5 {offsets = [0, 256], sizes = [256, 256], strides = [1, 1]} : vector<256x512xf32> to vector<256x256xf32>
    %8 = math.tanh %6 : vector<256x256xf32>
    %cst_5 = arith.constant 0.000000e+00 : f32
    %9 = vector.broadcast %cst_5 : f32 to vector<256x256xf32>
    %10 = arith.subf %9, %7 : vector<256x256xf32>
    %11 = math.exp %10 : vector<256x256xf32>
    %cst_6 = arith.constant 1.000000e+00 : f32
    %12 = vector.broadcast %cst_6 : f32 to vector<256x256xf32>
    %13 = arith.addf %12, %11 : vector<256x256xf32>
    %cst_7 = arith.constant 1.000000e+00 : f32
    %14 = vector.broadcast %cst_7 : f32 to vector<256x256xf32>
    %15 = arith.divf %14, %13 : vector<256x256xf32>
    %16 = arith.mulf %8, %15 : vector<256x256xf32>
    %c0_8 = arith.constant 0 : index
    %c0_9 = arith.constant 0 : index
    %17 = vector.load %arg4[%c0_8, %c0_9] : memref<256x128xf32, #tpu.memory_space<vmem>>, vector<256x128xf32>
    %cst_10 = arith.constant dense<0.000000e+00> : vector<256x128xf32>
    %18 = tpu.matmul %16, %17, %cst_10 {dimension_numbers = #tpu.dot_dimension_numbers<[1], [0], [0], [1], [0, 0, 1, 1], [], []>} : vector<256x256xf32>, vector<256x128xf32>, vector<256x128xf32> -> vector<256x128xf32>
    %c0_11 = arith.constant 0 : index
    %c0_12 = arith.constant 0 : index
    %19 = vector.load %arg5[%c0_11, %c0_12] : memref<1x128xf32, #tpu.memory_space<vmem>>, vector<1x128xf32>
    %20 = vector.broadcast %19 : vector<1x128xf32> to vector<256x128xf32>
    %21 = arith.addf %18, %20 : vector<256x128xf32>
    %22 = vector.extract_strided_slice %21 {offsets = [0, 0], sizes = [256, 1], strides = [1, 1]} : vector<256x128xf32> to vector<256x1xf32>
    %c0_13 = arith.constant 0 : index
    %c0_14 = arith.constant 0 : index
    %23 = vector.load %arg6[%c0_13, %c0_14] : memref<256x1xf32, #tpu.memory_space<vmem>>, vector<256x1xf32>
    tpu.vector_store %arg6[%c0_13, %c0_14], %22 {strides = array<i32>} : memref<256x1xf32, #tpu.memory_space<vmem>>, vector<256x1xf32>,
    return
  }
  func.func @transform_0(%arg0: i32) -> (i32, i32) {
    %c0_i32 = arith.constant 0 : i32
    %c0_i32_0 = arith.constant 0 : i32
    return %arg0, %c0_i32 : i32, i32
  }
  func.func @transform_1(%arg0: i32) -> (i32, i32) {
    %c0_i32 = arith.constant 0 : i32
    %c0_i32_0 = arith.constant 0 : i32
    %c0_i32_1 = arith.constant 0 : i32
    return %c0_i32, %c0_i32_0 : i32, i32
  }
  func.func @transform_2(%arg0: i32) -> (i32, i32) {
    %c0_i32 = arith.constant 0 : i32
    %c0_i32_0 = arith.constant 0 : i32
    %c0_i32_1 = arith.constant 0 : i32
    return %c0_i32, %c0_i32_0 : i32, i32
  }
  func.func @transform_3(%arg0: i32) -> (i32, i32) {
    %c0_i32 = arith.constant 0 : i32
    %c0_i32_0 = arith.constant 0 : i32
    %c0_i32_1 = arith.constant 0 : i32
    return %c0_i32, %c0_i32_0 : i32, i32
  }
  func.func @transform_4(%arg0: i32) -> (i32, i32) {
    %c0_i32 = arith.constant 0 : i32
    %c0_i32_0 = arith.constant 0 : i32
    %c0_i32_1 = arith.constant 0 : i32
    return %c0_i32, %c0_i32_0 : i32, i32
  }
  func.func @transform_5(%arg0: i32) -> (i32, i32) {
    %c0_i32 = arith.constant 0 : i32
    %c0_i32_0 = arith.constant 0 : i32
    return %arg0, %c0_i32 : i32, i32
  }
}

</mosaic_0001>

<llo_original>
// kernel: tpu_custom_call.1
$region0: #{tpu_custom_call.1}
  #allocation0 [shape = 'u32[]', space=smem, size = 0x4, offset = 0x4, fixed_abs, tag = 'smem constant byte address 0x4 - core index']
  #allocation1 [shape = 'u32[144,128]{1,0:T(1,128)}', space=vmem, size = 0x12000, scoped, tag = 'internal scratch']
  %s0 = inlined_call_operand.hbm [shape: f32[1000,256], index: 0, kind: input, shape index: {}]
  %s1 = inlined_call_operand.hbm [shape: f32[256,512], index: 1, kind: input, shape index: {}]
  %s2 = inlined_call_operand.vmem [shape: f32[1,512], index: 2, kind: input, shape index: {}]
  %s3 = inlined_call_operand.hbm [shape: f32[256,128], index: 3, kind: input, shape index: {}]
  %s4 = inlined_call_operand.vmem [shape: f32[1,128], index: 4, kind: input, shape index: {}]
  %s5 = inlined_call_operand.vmem [shape: f32[1000,1], index: 5, kind: output, shape index: {}]
  %s6 = sld [smem:[#allocation0]]
  $region113: #{tpu_custom_call.1} parent=0
    _
  %s8 = ssub.s32 1, %s6
  %s9 = scalar_select 0, %s8, %s6
  $region1: #{tpu_custom_call.1} parent=0
    #allocation2 [shape = 'u8[524288]{0}', space=vmem, size = 0x80000, scoped, tag = 'input window, operand 0']
    #allocation3 [shape = 's32[2]{0}', space=sflag, size = 0x8, scoped, tag = 'scoped memory for tpu_custom_call.1']
    #allocation4 [shape = 'u8[524288]{0}', space=vmem, size = 0x80000, scoped, tag = 'input window, operand 1, single buffered']
    #allocation5 [shape = 's32[1]{0}', space=sflag, size = 0x4, scoped, tag = 'scoped memory for tpu_custom_call.1']
    #allocation6 [shape = 'u8[131072]{0}', space=vmem, size = 0x20000, scoped, tag = 'input window, operand 3, single buffered']
    #allocation7 [shape = 'u8[262144]{0}', space=vmem, size = 0x40000, scoped, tag = 'output window, operand 0']
    %10 = vsyncpa [#allocation3], 0
    %s11 = scalar_lea.sflag [#allocation3], 1
    %12 = vsyncpa %s11, 0
    %13 = vsyncpa [#allocation5], 0
    loop: start=0, step=1, limit=6
    $region2: #{tpu_custom_call.1} parent=1 // loop_pre_header
      _
    $region3: #{tpu_custom_call.1} parent=1 // loop_header
      %s15 = sphi 0, %s19
      %p16 = scmp.ge.s32.totalorder %s15, 6
      %s25 = sphi 0, %s27
      %s28 = sphi 0, %s25
      %s29 = sphi 0, %s28
      %s45 = sphi 0, %s29
      %s49 = sphi 0, %s49
      %s51 = sphi 0, %s49
      %s52 = sphi 0, %s51
      %s66 = sphi 0, %s52
      %s70 = sphi 0, %s70
      %s72 = sphi 0, %s70
      %s73 = sphi 0, %s72
      %s87 = sphi 0, %s73
      %s91 = sphi 0, %s91
      %s93 = sphi 0, %s91
      %s94 = sphi 0, %s93
      %s108 = sphi 0, %s94
      %s112 = sphi 0, %s112
      %s114 = sphi 0, %s112
      %s115 = sphi 0, %s114
      %s129 = sphi 0, %s115
      %s135 = sphi 0, %s137
      %s138 = sphi 0, %s135
      %s139 = sphi 0, %s138
      %s155 = sphi 0, %s139
    $region4: #{tpu_custom_call.1} parent=1 // loop_header_branch
      %18 = sbr.rel (%p16) target = $region8
    $region5: #{tpu_custom_call.1} parent=1 // loop_body
      %s20 = ssub.s32 %s15, 1
      %s21 = ssub.s32 %s15, 2
      %s22 = sadd.s32 %s15, 1
      %s23 = ssub.s32 %s15, %s22
      %p24 = scmp.eq.s32.totalorder %s23, 0
      %s26 = sadd.s32 %s25, 1
      %s27 = scalar_select %p24, %s25, %s26
      %p30 = pneg %p24
      %p31 = scmp.eq.s32.totalorder %s15, 3
      %p32 = por %p30, %p31
      %p33 = scmp.ne.s32.totalorder %s25, %s28
      %p34 = scmp.eq.s32.totalorder %s15, 0
      %p35 = por %p33, %p34
      %p36 = scmp.ne.s32.totalorder %s25, %s28
      %p37 = scmp.eq.s32.totalorder %s20, 3
      %p38 = por %p36, %p37
      %p39 = scmp.ne.s32.totalorder %s28, %s29
      %p40 = scmp.eq.s32.totalorder %s20, 0
      %p41 = por %p39, %p40
      %p42 = scmp.ne.s32.totalorder %s28, %s29
      %p43 = scmp.eq.s32.totalorder %s21, 3
      %p44 = por %p42, %p43
      %p46 = scmp.ne.s32.totalorder %s29, %s45
      %p47 = scmp.eq.s32.totalorder %s21, 0
      %p48 = por %p46, %p47
      %s50 = sadd.s32 %s49, 1
      %p53 = scmp.eq.s32.totalorder %s15, 3
      %p54 = scmp.ne.s32.totalorder %s49, %s51
      %p55 = scmp.eq.s32.totalorder %s15, 0
      %p56 = por %p54, %p55
      %p57 = scmp.ne.s32.totalorder %s49, %s51
      %p58 = scmp.eq.s32.totalorder %s20, 3
      %p59 = por %p57, %p58
      %p60 = scmp.ne.s32.totalorder %s51, %s52
      %p61 = scmp.eq.s32.totalorder %s20, 0
      %p62 = por %p60, %p61
      %p63 = scmp.ne.s32.totalorder %s51, %s52
      %p64 = scmp.eq.s32.totalorder %s21, 3
      %p65 = por %p63, %p64
      %p67 = scmp.ne.s32.totalorder %s52, %s66
      %p68 = scmp.eq.s32.totalorder %s21, 0
      %p69 = por %p67, %p68
      %s71 = sadd.s32 %s70, 1
      %p74 = scmp.eq.s32.totalorder %s15, 3
      %p75 = scmp.ne.s32.totalorder %s70, %s72
      %p76 = scmp.eq.s32.totalorder %s15, 0
      %p77 = por %p75, %p76
      %p78 = scmp.ne.s32.totalorder %s70, %s72
      %p79 = scmp.eq.s32.totalorder %s20, 3
      %p80 = por %p78, %p79
      %p81 = scmp.ne.s32.totalorder %s72, %s73
      %p82 = scmp.eq.s32.totalorder %s20, 0
      %p83 = por %p81, %p82
      %p84 = scmp.ne.s32.totalorder %s72, %s73
      %p85 = scmp.eq.s32.totalorder %s21, 3
      %p86 = por %p84, %p85
      %p88 = scmp.ne.s32.totalorder %s73, %s87
      %p89 = scmp.eq.s32.totalorder %s21, 0
      %p90 = por %p88, %p89
      %s92 = sadd.s32 %s91, 1
      %p95 = scmp.eq.s32.totalorder %s15, 3
      %p96 = scmp.ne.s32.totalorder %s91, %s93
      %p97 = scmp.eq.s32.totalorder %s15, 0
      %p98 = por %p96, %p97
      %p99 = scmp.ne.s32.totalorder %s91, %s93
      %p100 = scmp.eq.s32.totalorder %s20, 3
      %p101 = por %p99, %p100
      %p102 = scmp.ne.s32.totalorder %s93, %s94
      %p103 = scmp.eq.s32.totalorder %s20, 0
      %p104 = por %p102, %p103
      %p105 = scmp.ne.s32.totalorder %s93, %s94
      %p106 = scmp.eq.s32.totalorder %s21, 3
      %p107 = por %p105, %p106
      %p109 = scmp.ne.s32.totalorder %s94, %s108
      %p110 = scmp.eq.s32.totalorder %s21, 0
      %p111 = por %p109, %p110
      %s113 = sadd.s32 %s112, 1
      %p116 = scmp.eq.s32.totalorder %s15, 3
      %p117 = scmp.ne.s32.totalorder %s112, %s114
      %p118 = scmp.eq.s32.totalorder %s15, 0
      %p119 = por %p117, %p118
      %p120 = scmp.ne.s32.totalorder %s112, %s114
      %p121 = scmp.eq.s32.totalorder %s20, 3
      %p122 = por %p120, %p121
      %p123 = scmp.ne.s32.totalorder %s114, %s115
      %p124 = scmp.eq.s32.totalorder %s20, 0
      %p125 = por %p123, %p124
      %p126 = scmp.ne.s32.totalorder %s114, %s115
      %p127 = scmp.eq.s32.totalorder %s21, 3
      %p128 = por %p126, %p127
      %p130 = scmp.ne.s32.totalorder %s115, %s129
      %p131 = scmp.eq.s32.totalorder %s21, 0
      %p132 = por %p130, %p131
      %s133 = ssub.s32 %s15, %s22
      %p134 = scmp.eq.s32.totalorder %s133, 0
      %s136 = sadd.s32 %s135, 1
      %s137 = scalar_select %p134, %s135, %s136
      %p140 = pneg %p134
      %p141 = scmp.eq.s32.totalorder %s15, 3
      %p142 = por %p140, %p141
      %p143 = scmp.ne.s32.totalorder %s135, %s138
      %p144 = scmp.eq.s32.totalorder %s15, 0
      %p145 = por %p143, %p144
      %p146 = scmp.ne.s32.totalorder %s135, %s138
      %p147 = scmp.eq.s32.totalorder %s20, 3
      %p148 = por %p146, %p147
      %p149 = scmp.ne.s32.totalorder %s138, %s139
      %p150 = scmp.eq.s32.totalorder %s20, 0
      %p151 = por %p149, %p150
      %p152 = scmp.ne.s32.totalorder %s138, %s139
      %p153 = scmp.eq.s32.totalorder %s21, 3
      %p154 = por %p152, %p153
      %p156 = scmp.ne.s32.totalorder %s139, %s155
      %p157 = scmp.eq.s32.totalorder %s21, 0
      %p158 = por %p156, %p157
      %p159 = scmp.le.s32.totalorder 1, %s15
      %p160 = scmp.lt.s32.totalorder %s15, 5
      %p161 = pnand %p159, %p160
      %p162 = pneg %p161
      // Predicated region
      $region9: #{tpu_custom_call.1} parent=5 // pred_check
        _
      $region10: #{tpu_custom_call.1} parent=5 // pred_check_branch
        %164 = sbr.rel (%p161) target = $region12
      $region11: #{tpu_custom_call.1} parent=5 // pred_region
        %s165 = ssub.s32 %s15, 1
        // Predicated region
        $region13: #{tpu_custom_call.1} parent=11 // pred_check
          %p166 = pneg %p62
        $region14: #{tpu_custom_call.1} parent=11 // pred_check_branch
          %168 = sbr.rel (%p166) target = $region16
        $region15: #{tpu_custom_call.1} parent=11 // pred_region
          %s170 = ssub.s32 16384, 16384
          %171 = vsyncadd [#allocation5], %s170
          %s172 = sshll.u32 [#allocation4], 4
          %s173 = int_to_ptr.vmem [resolvable:$true] %s172
          %178 = dma.hbm_to_vmem [thread:$0]  %s1, 16384, %s173, [#allocation5], 512, 512, 32
        $region16: #{tpu_custom_call.1} parent=11 // pred_fallthru
          _
        // Predicated region
        $region17: #{tpu_custom_call.1} parent=11 // pred_check
          %p179 = pneg %p83
        $region18: #{tpu_custom_call.1} parent=11 // pred_check_branch
          %181 = sbr.rel (%p179) target = $region20
        $region19: #{tpu_custom_call.1} parent=11 // pred_region
          _
        $region20: #{tpu_custom_call.1} parent=11 // pred_fallthru
          _
        // Predicated region
        $region21: #{tpu_custom_call.1} parent=11 // pred_check
          %p182 = pneg %p104
        $region22: #{tpu_custom_call.1} parent=11 // pred_check_branch
          %184 = sbr.rel (%p182) target = $region24
        $region23: #{tpu_custom_call.1} parent=11 // pred_region
          %s186 = ssub.s32 4096, 4096
          %187 = vsyncadd [#allocation5], %s186
          %s188 = sshll.u32 [#allocation6], 4
          %s189 = int_to_ptr.vmem [resolvable:$true] %s188
          %194 = dma.hbm_to_vmem [thread:$0]  %s3, 4096, %s189, [#allocation5], 128, 128, 8
        $region24: #{tpu_custom_call.1} parent=11 // pred_fallthru
          _
        // Predicated region
        $region25: #{tpu_custom_call.1} parent=11 // pred_check
          %p195 = pneg %p125
        $region26: #{tpu_custom_call.1} parent=11 // pred_check_branch
          %197 = sbr.rel (%p195) target = $region28
        $region27: #{tpu_custom_call.1} parent=11 // pred_region
          _
        $region28: #{tpu_custom_call.1} parent=11 // pred_fallthru
          _
      $region12: #{tpu_custom_call.1} parent=5 // pred_fallthru
        _
      %p198 = scmp.lt.s32.totalorder %s15, 4
      // Predicated region
      $region29: #{tpu_custom_call.1} parent=5 // pred_check
        %p199 = pneg %p198
      $region30: #{tpu_custom_call.1} parent=5 // pred_check_branch
        %201 = sbr.rel (%p199) target = $region32
      $region31: #{tpu_custom_call.1} parent=5 // pred_region
        // Predicated region
        $region33: #{tpu_custom_call.1} parent=31 // pred_check
          %p202 = pneg %p35
        $region34: #{tpu_custom_call.1} parent=31 // pred_check_branch
          %204 = sbr.rel (%p202) target = $region36
        $region35: #{tpu_custom_call.1} parent=31 // pred_region
          %s205 = sand.u32 %s25, 1
          %s206 = scalar_lea.sflag [#allocation3], %s205
          %s207 = sand.u32 %s25, 1
          %s208 = smul.addr %s207, 512
          %s209 = scalar_lea.vmem [#allocation2], %s208
          %s210 = smul.u32 32, %s15
          %s211 = ssub.s32 125, %s210
          %p212 = scmp.lt.s32.totalorder %s211, 32
          %s213 = scalar_select %p212, %s211, 32
          %s214 = smul.u32 128, %s213
          %s215 = smul.u32 %s214, 2
          %s217 = ssub.s32 8192, %s215
          %218 = vsyncadd %s206, %s217
          %p219 = scmp.ne.s32.totalorder 0, %s215
          %s220 = smul.addr %s210, 2
          %s221 = smul.addr %s220, 128
          %s222 = scalar_lea.hbm %s0, %s221
          %s223 = smul.u32 16, %s213
          %s224 = sshll.u32 %s209, 4
          %s225 = int_to_ptr.vmem [resolvable:$true] %s224
          %s226 = sshll.u32 %s223, 4
          %230 = dma.hbm_to_vmem [thread:$0]  (%p219), %s222, %s226, %s225, %s206, 256, 256, 16
        $region36: #{tpu_custom_call.1} parent=31 // pred_fallthru
          _
      $region32: #{tpu_custom_call.1} parent=5 // pred_fallthru
        _
      %p231 = scmp.le.s32.totalorder 1, %s15
      %p232 = scmp.lt.s32.totalorder %s15, 5
      %p233 = pnand %p231, %p232
      %p234 = pneg %p233
      // Predicated region
      $region37: #{tpu_custom_call.1} parent=5 // pred_check
        _
      $region38: #{tpu_custom_call.1} parent=5 // pred_check_branch
        %236 = sbr.rel (%p233) target = $region40
      $region39: #{tpu_custom_call.1} parent=5 // pred_region
        %s237 = ssub.s32 %s15, 1
        %s238 = sand.u32 %s28, 1
        %s239 = scalar_lea.sflag [#allocation3], %s238
        %s240 = sand.u32 %s28, 1
        %s241 = smul.addr %s240, 512
        %s242 = scalar_lea.vmem [#allocation2], %s241
        // Predicated region
        $region41: #{tpu_custom_call.1} parent=39 // pred_check
          %p243 = pneg %p41
        $region42: #{tpu_custom_call.1} parent=39 // pred_check_branch
          %245 = sbr.rel (%p243) target = $region44
        $region43: #{tpu_custom_call.1} parent=39 // pred_region
          %246 = dma.done %s239, 8192
        $region44: #{tpu_custom_call.1} parent=39 // pred_fallthru
          _
        // Predicated region
        $region45: #{tpu_custom_call.1} parent=39 // pred_check
          %p247 = pneg %p62
        $region46: #{tpu_custom_call.1} parent=39 // pred_check_branch
          %249 = sbr.rel (%p247) target = $region48
        $region47: #{tpu_custom_call.1} parent=39 // pred_region
          %250 = dma.done [#allocation5], 16384
        $region48: #{tpu_custom_call.1} parent=39 // pred_fallthru
          _
        // Predicated region
        $region49: #{tpu_custom_call.1} parent=39 // pred_check
          %p251 = pneg %p104
        $region50: #{tpu_custom_call.1} parent=39 // pred_check_branch
          %253 = sbr.rel (%p251) target = $region52
        $region51: #{tpu_custom_call.1} parent=39 // pred_region
          %254 = dma.done [#allocation5], 4096
        $region52: #{tpu_custom_call.1} parent=39 // pred_fallthru
          _
        %s255 = sand.u32 %s28, 1
        %s256 = scalar_lea.sflag [#allocation3], %s255
        %s257 = sand.u32 %s28, 1
        %s258 = smul.addr %s257, 512
        %s259 = scalar_lea.vmem [#allocation2], %s258
        %p260 = pneg %p41
        %p261 = pneg %p38
        %p262 = pneg %p62
        %p263 = pneg %p59
        %p264 = pneg %p83
        %p265 = pneg %p80
        %p266 = pneg %p104
        %p267 = pneg %p101
        %p268 = pneg %p125
        %p269 = pneg %p122
        %p270 = pneg %p151
        %p271 = pneg %p148
        %s272 = sand.u32 %s138, 1
        %s273 = sand.u32 %s138, 1
        %s274 = smul.addr %s273, 256
        %s275 = scalar_lea.vmem [#allocation7], %s274
        %s276 = smul.u32 32, %s20
        %s277 = ssub.s32 125, %s276
        %p278 = scmp.lt.s32.totalorder %s277, 32
        %s279 = scalar_select %p278, %s277, 32
        %s280 = smul.u32 128, %s279
        %s281 = smul.u32 %s280, 2
        %s282 = smul.u32 32, %s20
        %s283 = ssub.s32 125, %s282
        %p284 = scmp.lt.s32.totalorder %s283, 32
        %s285 = scalar_select %p284, %s283, 32
        %s286 = smul.u32 128, %s285
        %v287 = vld [vmem:[%s242] sm:$0xff]
        %v288 = vld [vmem:[%s242 + $0x8] sm:$0xff]
        %v289 = vld [vmem:[%s242 + $0x10] sm:$0xff]
        %v290 = vld [vmem:[%s242 + $0x18] sm:$0xff]
        %v291 = vld [vmem:[%s242 + $0x20] sm:$0xff]
        %v292 = vld [vmem:[%s242 + $0x28] sm:$0xff]
        %v293 = vld [vmem:[%s242 + $0x30] sm:$0xff]
        %v294 = vld [vmem:[%s242 + $0x38] sm:$0xff]
        %v295 = vld [vmem:[%s242 + $0x40] sm:$0xff]
        %v296 = vld [vmem:[%s242 + $0x48] sm:$0xff]
        %v297 = vld [vmem:[%s242 + $0x50] sm:$0xff]
        %v298 = vld [vmem:[%s242 + $0x58] sm:$0xff]
        %v299 = vld [vmem:[%s242 + $0x60] sm:$0xff]
        %v300 = vld [vmem:[%s242 + $0x68] sm:$0xff]
        %v301 = vld [vmem:[%s242 + $0x70] sm:$0xff]
        %v302 = vld [vmem:[%s242 + $0x78] sm:$0xff]
        %v303 = vld [vmem:[%s242 + $0x80] sm:$0xff]
        %v304 = vld [vmem:[%s242 + $0x88] sm:$0xff]
        %v305 = vld [vmem:[%s242 + $0x90] sm:$0xff]
        %v306 = vld [vmem:[%s242 + $0x98] sm:$0xff]
        %v307 = vld [vmem:[%s242 + $0xa0] sm:$0xff]
        %v308 = vld [vmem:[%s242 + $0xa8] sm:$0xff]
        %v309 = vld [vmem:[%s242 + $0xb0] sm:$0xff]
        %v310 = vld [vmem:[%s242 + $0xb8] sm:$0xff]
        %v311 = vld [vmem:[%s242 + $0xc0] sm:$0xff]
        %v312 = vld [vmem:[%s242 + $0xc8] sm:$0xff]
        %v313 = vld [vmem:[%s242 + $0xd0] sm:$0xff]
        %v314 = vld [vmem:[%s242 + $0xd8] sm:$0xff]
        %v315 = vld [vmem:[%s242 + $0xe0] sm:$0xff]
        %v316 = vld [vmem:[%s242 + $0xe8] sm:$0xff]
        %v317 = vld [vmem:[%s242 + $0xf0] sm:$0xff]
        %v318 = vld [vmem:[%s242 + $0xf8] sm:$0xff]
        %v319 = vld [vmem:[%s242 + $0x100] sm:$0xff]
        %v320 = vld [vmem:[%s242 + $0x108] sm:$0xff]
        %v321 = vld [vmem:[%s242 + $0x110] sm:$0xff]
        %v322 = vld [vmem:[%s242 + $0x118] sm:$0xff]
        %v323 = vld [vmem:[%s242 + $0x120] sm:$0xff]
        %v324 = vld [vmem:[%s242 + $0x128] sm:$0xff]
        %v325 = vld [vmem:[%s242 + $0x130] sm:$0xff]
        %v326 = vld [vmem:[%s242 + $0x138] sm:$0xff]
        %v327 = vld [vmem:[%s242 + $0x140] sm:$0xff]
        %v328 = vld [vmem:[%s242 + $0x148] sm:$0xff]
        %v329 = vld [vmem:[%s242 + $0x150] sm:$0xff]
        %v330 = vld [vmem:[%s242 + $0x158] sm:$0xff]
        %v331 = vld [vmem:[%s242 + $0x160] sm:$0xff]
        %v332 = vld [vmem:[%s242 + $0x168] sm:$0xff]
        %v333 = vld [vmem:[%s242 + $0x170] sm:$0xff]
        %v334 = vld [vmem:[%s242 + $0x178] sm:$0xff]
        %v335 = vld [vmem:[%s242 + $0x180] sm:$0xff]
        %v336 = vld [vmem:[%s242 + $0x188] sm:$0xff]
        %v337 = vld [vmem:[%s242 + $0x190] sm:$0xff]
        %v338 = vld [vmem:[%s242 + $0x198] sm:$0xff]
        %v339 = vld [vmem:[%s242 + $0x1a0] sm:$0xff]
        %v340 = vld [vmem:[%s242 + $0x1a8] sm:$0xff]
        %v341 = vld [vmem:[%s242 + $0x1b0] sm:$0xff]
        %v342 = vld [vmem:[%s242 + $0x1b8] sm:$0xff]
        %v343 = vld [vmem:[%s242 + $0x1c0] sm:$0xff]
        %v344 = vld [vmem:[%s242 + $0x1c8] sm:$0xff]
        %v345 = vld [vmem:[%s242 + $0x1d0] sm:$0xff]
        %v346 = vld [vmem:[%s242 + $0x1d8] sm:$0xff]
        %v347 = vld [vmem:[%s242 + $0x1e0] sm:$0xff]
        %v348 = vld [vmem:[%s242 + $0x1e8] sm:$0xff]
        %v349 = vld [vmem:[%s242 + $0x1f0] sm:$0xff]
        %v350 = vld [vmem:[%s242 + $0x1f8] sm:$0xff]
        %v351 = vld [vmem:[#allocation4] sm:$0xff]
        %v352 = vld [vmem:[#allocation4 + $0x8] sm:$0xff]
        %v353 = vld [vmem:[#allocation4 + $0x10] sm:$0xff]
        %v354 = vld [vmem:[#allocation4 + $0x18] sm:$0xff]
        %v355 = vld [vmem:[#allocation4 + $0x20] sm:$0xff]
        %v356 = vld [vmem:[#allocation4 + $0x28] sm:$0xff]
        %v357 = vld [vmem:[#allocation4 + $0x30] sm:$0xff]
        %v358 = vld [vmem:[#allocation4 + $0x38] sm:$0xff]
        %v359 = vld [vmem:[#allocation4 + $0x40] sm:$0xff]
        %v360 = vld [vmem:[#allocation4 + $0x48] sm:$0xff]
        %v361 = vld [vmem:[#allocation4 + $0x50] sm:$0xff]
        %v362 = vld [vmem:[#allocation4 + $0x58] sm:$0xff]
        %v363 = vld [vmem:[#allocation4 + $0x60] sm:$0xff]
        %v364 = vld [vmem:[#allocation4 + $0x68] sm:$0xff]
        %v365 = vld [vmem:[#allocation4 + $0x70] sm:$0xff]
        %v366 = vld [vmem:[#allocation4 + $0x78] sm:$0xff]
        %v367 = vld [vmem:[#allocation4 + $0x80] sm:$0xff]
        %v368 = vld [vmem:[#allocation4 + $0x88] sm:$0xff]
        %v369 = vld [vmem:[#allocation4 + $0x90] sm:$0xff]
        %v370 = vld [vmem:[#allocation4 + $0x98] sm:$0xff]
        %v371 = vld [vmem:[#allocation4 + $0xa0] sm:$0xff]
        %v372 = vld [vmem:[#allocation4 + $0xa8] sm:$0xff]
        %v373 = vld [vmem:[#allocation4 + $0xb0] sm:$0xff]
        %v374 = vld [vmem:[#allocation4 + $0xb8] sm:$0xff]
        %v375 = vld [vmem:[#allocation4 + $0xc0] sm:$0xff]
        %v376 = vld [vmem:[#allocation4 + $0xc8] sm:$0xff]
        %v377 = vld [vmem:[#allocation4 + $0xd0] sm:$0xff]
        %v378 = vld [vmem:[#allocation4 + $0xd8] sm:$0xff]
        %v379 = vld [vmem:[#allocation4 + $0xe0] sm:$0xff]
        %v380 = vld [vmem:[#allocation4 + $0xe8] sm:$0xff]
        %v381 = vld [vmem:[#allocation4 + $0xf0] sm:$0xff]
        %v382 = vld [vmem:[#allocation4 + $0xf8] sm:$0xff]
        %v383 = vld [vmem:[#allocation4 + $0x100] sm:$0xff]
        %v384 = vld [vmem:[#allocation4 + $0x108] sm:$0xff]
        %v385 = vld [vmem:[#allocation4 + $0x110] sm:$0xff]
        %v386 = vld [vmem:[#allocation4 + $0x118] sm:$0xff]
        %v387 = vld [vmem:[#allocation4 + $0x120] sm:$0xff]
        %v388 = vld [vmem:[#allocation4 + $0x128] sm:$0xff]
        %v389 = vld [vmem:[#allocation4 + $0x130] sm:$0xff]
        %v390 = vld [vmem:[#allocation4 + $0x138] sm:$0xff]
        %v391 = vld [vmem:[#allocation4 + $0x140] sm:$0xff]
        %v392 = vld [vmem:[#allocation4 + $0x148] sm:$0xff]
        %v393 = vld [vmem:[#allocation4 + $0x150] sm:$0xff]
        %v394 = vld [vmem:[#allocation4 + $0x158] sm:$0xff]
        %v395 = vld [vmem:[#allocation4 + $0x160] sm:$0xff]
        %v396 = vld [vmem:[#allocation4 + $0x168] sm:$0xff]
        %v397 = vld [vmem:[#allocation4 + $0x170] sm:$0xff]
        %v398 = vld [vmem:[#allocation4 + $0x178] sm:$0xff]
        %v399 = vld [vmem:[#allocation4 + $0x180] sm:$0xff]
        %v400 = vld [vmem:[#allocation4 + $0x188] sm:$0xff]
        %v401 = vld [vmem:[#allocation4 + $0x190] sm:$0xff]
        %v402 = vld [vmem:[#allocation4 + $0x198] sm:$0xff]
        %v403 = vld [vmem:[#allocation4 + $0x1a0] sm:$0xff]
        %v404 = vld [vmem:[#allocation4 + $0x1a8] sm:$0xff]
        %v405 = vld [vmem:[#allocation4 + $0x1b0] sm:$0xff]
        %v406 = vld [vmem:[#allocation4 + $0x1b8] sm:$0xff]
        %v407 = vld [vmem:[#allocation4 + $0x1c0] sm:$0xff]
        %v408 = vld [vmem:[#allocation4 + $0x1c8] sm:$0xff]
        %v409 = vld [vmem:[#allocation4 + $0x1d0] sm:$0xff]
        %v410 = vld [vmem:[#allocation4 + $0x1d8] sm:$0xff]
        %v411 = vld [vmem:[#allocation4 + $0x1e0] sm:$0xff]
        %v412 = vld [vmem:[#allocation4 + $0x1e8] sm:$0xff]
        %v413 = vld [vmem:[#allocation4 + $0x1f0] sm:$0xff]
        %v414 = vld [vmem:[#allocation4 + $0x1f8] sm:$0xff]
        %v415 = vld [vmem:[#allocation4 + $0x200] sm:$0xff]
        %v416 = vld [vmem:[#allocation4 + $0x208] sm:$0xff]
        %v417 = vld [vmem:[#allocation4 + $0x210] sm:$0xff]
        %v418 = vld [vmem:[#allocation4 + $0x218] sm:$0xff]
        %v419 = vld [vmem:[#allocation4 + $0x220] sm:$0xff]
        %v420 = vld [vmem:[#allocation4 + $0x228] sm:$0xff]
        %v421 = vld [vmem:[#allocation4 + $0x230] sm:$0xff]
        %v422 = vld [vmem:[#allocation4 + $0x238] sm:$0xff]
        %v423 = vld [vmem:[#allocation4 + $0x240] sm:$0xff]
        %v424 = vld [vmem:[#allocation4 + $0x248] sm:$0xff]
        %v425 = vld [vmem:[#allocation4 + $0x250] sm:$0xff]
        %v426 = vld [vmem:[#allocation4 + $0x258] sm:$0xff]
        %v427 = vld [vmem:[#allocation4 + $0x260] sm:$0xff]
        %v428 = vld [vmem:[#allocation4 + $0x268] sm:$0xff]
        %v429 = vld [vmem:[#allocation4 + $0x270] sm:$0xff]
        %v430 = vld [vmem:[#allocation4 + $0x278] sm:$0xff]
        %v431 = vld [vmem:[#allocation4 + $0x280] sm:$0xff]
        %v432 = vld [vmem:[#allocation4 + $0x288] sm:$0xff]
        %v433 = vld [vmem:[#allocation4 + $0x290] sm:$0xff]
        %v434 = vld [vmem:[#allocation4 + $0x298] sm:$0xff]
        %v435 = vld [vmem:[#allocation4 + $0x2a0] sm:$0xff]
        %v436 = vld [vmem:[#allocation4 + $0x2a8] sm:$0xff]
        %v437 = vld [vmem:[#allocation4 + $0x2b0] sm:$0xff]
        %v438 = vld [vmem:[#allocation4 + $0x2b8] sm:$0xff]
        %v439 = vld [vmem:[#allocation4 + $0x2c0] sm:$0xff]
        %v440 = vld [vmem:[#allocation4 + $0x2c8] sm:$0xff]
        %v441 = vld [vmem:[#allocation4 + $0x2d0] sm:$0xff]
        %v442 = vld [vmem:[#allocation4 + $0x2d8] sm:$0xff]
        %v443 = vld [vmem:[#allocation4 + $0x2e0] sm:$0xff]
        %v444 = vld [vmem:[#allocation4 + $0x2e8] sm:$0xff]
        %v445 = vld [vmem:[#allocation4 + $0x2f0] sm:$0xff]
        %v446 = vld [vmem:[#allocation4 + $0x2f8] sm:$0xff]
        %v447 = vld [vmem:[#allocation4 + $0x300] sm:$0xff]
        %v448 = vld [vmem:[#allocation4 + $0x308] sm:$0xff]
        %v449 = vld [vmem:[#allocation4 + $0x310] sm:$0xff]
        %v450 = vld [vmem:[#allocation4 + $0x318] sm:$0xff]
        %v451 = vld [vmem:[#allocation4 + $0x320] sm:$0xff]
        %v452 = vld [vmem:[#allocation4 + $0x328] sm:$0xff]
        %v453 = vld [vmem:[#allocation4 + $0x330] sm:$0xff]
        %v454 = vld [vmem:[#allocation4 + $0x338] sm:$0xff]
        %v455 = vld [vmem:[#allocation4 + $0x340] sm:$0xff]
        %v456 = vld [vmem:[#allocation4 + $0x348] sm:$0xff]
        %v457 = vld [vmem:[#allocation4 + $0x350] sm:$0xff]
        %v458 = vld [vmem:[#allocation4 + $0x358] sm:$0xff]
        %v459 = vld [vmem:[#allocation4 + $0x360] sm:$0xff]
        %v460 = vld [vmem:[#allocation4 + $0x368] sm:$0xff]
        %v461 = vld [vmem:[#allocation4 + $0x370] sm:$0xff]
        %v462 = vld [vmem:[#allocation4 + $0x378] sm:$0xff]
        %v463 = vld [vmem:[#allocation4 + $0x380] sm:$0xff]
        %v464 = vld [vmem:[#allocation4 + $0x388] sm:$0xff]
        %v465 = vld [vmem:[#allocation4 + $0x390] sm:$0xff]
        %v466 = vld [vmem:[#allocation4 + $0x398] sm:$0xff]
        %v467 = vld [vmem:[#allocation4 + $0x3a0] sm:$0xff]
        %v468 = vld [vmem:[#allocation4 + $0x3a8] sm:$0xff]
        %v469 = vld [vmem:[#allocation4 + $0x3b0] sm:$0xff]
        %v470 = vld [vmem:[#allocation4 + $0x3b8] sm:$0xff]
        %v471 = vld [vmem:[#allocation4 + $0x3c0] sm:$0xff]
        %v472 = vld [vmem:[#allocation4 + $0x3c8] sm:$0xff]
        %v473 = vld [vmem:[#allocation4 + $0x3d0] sm:$0xff]
        %v474 = vld [vmem:[#allocation4 + $0x3d8] sm:$0xff]
        %v475 = vld [vmem:[#allocation4 + $0x3e0] sm:$0xff]
        %v476 = vld [vmem:[#allocation4 + $0x3e8] sm:$0xff]
        %v477 = vld [vmem:[#allocation4 + $0x3f0] sm:$0xff]
        %v478 = vld [vmem:[#allocation4 + $0x3f8] sm:$0xff]
        %v479 = vld [vmem:[%s2] sm:$0xf]
        %v481 = vlaneseq
        %v482 = vshrl.u32 %v481, 7
        %v483 = vsub.s32 0, %v482
        %v484 = vrot.slane %v479, %v483
        %v485 = vlaneseq
        %v486 = vshrl.u32 %v485, 7
        %v487 = vsub.s32 1, %v486
        %v488 = vrot.slane %v479, %v487
        %v489 = vlaneseq
        %v490 = vshrl.u32 %v489, 7
        %v491 = vsub.s32 2, %v490
        %v492 = vrot.slane %v479, %v491
        %v493 = vlaneseq
        %v494 = vshrl.u32 %v493, 7
        %v495 = vsub.s32 3, %v494
        %v496 = vrot.slane %v479, %v495
        %501 = vmatprep.subr.mxu0 %v352
        %502 = vmatpush1.msra.mxu0 %v351
        %503 = vmatprep.subr.mxu0 %v356
        %504 = vmatpush1.msra.mxu0 %v355
        %505 = vmatprep.subr.mxu0 %v360
        %506 = vmatpush1.msra.mxu0 %v359
        %507 = vmatprep.subr.mxu0 %v364
        %508 = vmatpush1.msra.mxu0 %v363
        %509 = vmatprep.subr.mxu0 %v368
        %510 = vmatpush1.msra.mxu0 %v367
        %511 = vmatprep.subr.mxu0 %v372
        %512 = vmatpush1.msra.mxu0 %v371
        %513 = vmatprep.subr.mxu0 %v376
        %514 = vmatpush1.msra.mxu0 %v375
        %515 = vmatprep.subr.mxu0 %v380
        %516 = vmatpush1.msra.mxu0 %v379
        %517 = vmatprep.subr.mxu0 %v384
        %518 = vmatpush1.msra.mxu0 %v383
        %519 = vmatprep.subr.mxu0 %v388
        %520 = vmatpush1.msra.mxu0 %v387
        %521 = vmatprep.subr.mxu0 %v392
        %522 = vmatpush1.msra.mxu0 %v391
        %523 = vmatprep.subr.mxu0 %v396
        %524 = vmatpush1.msra.mxu0 %v395
        %525 = vmatprep.subr.mxu0 %v400
        %526 = vmatpush1.msra.mxu0 %v399
        %527 = vmatprep.subr.mxu0 %v404
        %528 = vmatpush1.msra.mxu0 %v403
        %529 = vmatprep.subr.mxu0 %v408
        %530 = vmatpush1.msra.mxu0 %v407
        %531 = vmatprep.subr.mxu0 %v412
        %532 = vmatpush1.msra.mxu0 %v411
        %533 = vmatprep.subr.mxu0 %v416
        %534 = vmatpush1.msra.mxu0 %v415
        %535 = vmatprep.subr.mxu0 %v420
        %536 = vmatpush1.msra.mxu0 %v419
        %537 = vmatprep.subr.mxu0 %v424
        %538 = vmatpush1.msra.mxu0 %v423
        %539 = vmatprep.subr.mxu0 %v428
        %540 = vmatpush1.msra.mxu0 %v427
        %541 = vmatprep.subr.mxu0 %v432
        %542 = vmatpush1.msra.mxu0 %v431
        %543 = vmatprep.subr.mxu0 %v436
        %544 = vmatpush1.msra.mxu0 %v435
        %545 = vmatprep.subr.mxu0 %v440
        %546 = vmatpush1.msra.mxu0 %v439
        %547 = vmatprep.subr.mxu0 %v444
        %548 = vmatpush1.msra.mxu0 %v443
        %549 = vmatprep.subr.mxu0 %v448
        %550 = vmatpush1.msra.mxu0 %v447
        %551 = vmatprep.subr.mxu0 %v452
        %552 = vmatpush1.msra.mxu0 %v451
        %553 = vmatprep.subr.mxu0 %v456
        %554 = vmatpush1.msra.mxu0 %v455
        %555 = vmatprep.subr.mxu0 %v460
        %556 = vmatpush1.msra.mxu0 %v459
        %557 = vmatprep.subr.mxu0 %v464
        %558 = vmatpush1.msra.mxu0 %v463
        %559 = vmatprep.subr.mxu0 %v468
        %560 = vmatpush1.msra.mxu0 %v467
        %561 = vmatprep.subr.mxu0 %v472
        %562 = vmatpush1.msra.mxu0 %v471
        %563 = vmatprep.subr.mxu0 %v476
        %564 = vmatpush1.msra.mxu0 %v475
        %565 = vmatprep.mubr.f32.mxu0 %v288
        %566 = vmatmul.mubr.f32.gmra.mrb[0].mxu0 %v287
        %v567 = vpop.f32.mrb[0].mxu0
        %v568 = vadd.f32 %v484, %v567
        %v569 = vpop.f32.mrb[0].mxu0
        %v570 = vadd.f32 %v488, %v569
        %571 = vmatprep.mubr.f32.mxu0 %v290
        %572 = vmatmul.mubr.f32.gmra.mrb[0].mxu0 %v289
        %v573 = vpop.f32.mrb[0].mxu0
        %v574 = vadd.f32 %v484, %v573
        %v575 = vpop.f32.mrb[0].mxu0
        %v576 = vadd.f32 %v488, %v575
        %577 = vmatprep.mubr.f32.mxu0 %v292
        %578 = vmatmul.mubr.f32.gmra.mrb[0].mxu0 %v291
        %v579 = vpop.f32.mrb[0].mxu0
        %v580 = vadd.f32 %v484, %v579
        %v581 = vpop.f32.mrb[0].mxu0
        %v582 = vadd.f32 %v488, %v581
        %583 = vmatprep.mubr.f32.mxu0 %v294
        %584 = vmatmul.mubr.f32.gmra.mrb[0].mxu0 %v293
        %v585 = vpop.f32.mrb[0].mxu0
        %v586 = vadd.f32 %v484, %v585
        %v587 = vpop.f32.mrb[0].mxu0
        %v588 = vadd.f32 %v488, %v587
        %589 = vmatprep.mubr.f32.mxu0 %v296
        %590 = vmatmul.mubr.f32.gmra.mrb[0].mxu0 %v295
        %v591 = vpop.f32.mrb[0].mxu0
        %v592 = vadd.f32 %v484, %v591
        %v593 = vpop.f32.mrb[0].mxu0
        %v594 = vadd.f32 %v488, %v593
        %595 = vmatprep.mubr.f32.mxu0 %v298
        %596 = vmatmul.mubr.f32.gmra.mrb[0].mxu0 %v297
        %v597 = vpop.f32.mrb[0].mxu0
        %v598 = vadd.f32 %v484, %v597
        %v599 = vpop.f32.mrb[0].mxu0
        %v600 = vadd.f32 %v488, %v599
        %601 = vmatprep.mubr.f32.mxu0 %v300
        %602 = vmatmul.mubr.f32.gmra.mrb[0].mxu0 %v299
        %v603 = vpop.f32.mrb[0].mxu0
        %v604 = vadd.f32 %v484, %v603
        %v605 = vpop.f32.mrb[0].mxu0
        %v606 = vadd.f32 %v488, %v605
        %607 = vmatprep.mubr.f32.mxu0 %v302
        %608 = vmatmul.mubr.f32.gmra.mrb[0].mxu0 %v301
        %v609 = vpop.f32.mrb[0].mxu0
        %v610 = vadd.f32 %v484, %v609
        %v611 = vpop.f32.mrb[0].mxu0
        %v612 = vadd.f32 %v488, %v611
        %613 = vmatprep.mubr.f32.mxu0 %v304
        %614 = vmatmul.mubr.f32.gmra.mrb[0].mxu0 %v303
        %v615 = vpop.f32.mrb[0].mxu0
        %v616 = vadd.f32 %v484, %v615
        %v617 = vpop.f32.mrb[0].mxu0
        %v618 = vadd.f32 %v488, %v617
        %619 = vmatprep.mubr.f32.mxu0 %v306
        %620 = vmatmul.mubr.f32.gmra.mrb[0].mxu0 %v305
        %v621 = vpop.f32.mrb[0].mxu0
        %v622 = vadd.f32 %v484, %v621
        %v623 = vpop.f32.mrb[0].mxu0
        %v624 = vadd.f32 %v488, %v623
        %625 = vmatprep.mubr.f32.mxu0 %v308
        %626 = vmatmul.mubr.f32.gmra.mrb[0].mxu0 %v307
        %v627 = vpop.f32.mrb[0].mxu0
        %v628 = vadd.f32 %v484, %v627
        %v629 = vpop.f32.mrb[0].mxu0
        %v630 = vadd.f32 %v488, %v629
        %631 = vmatprep.mubr.f32.mxu0 %v310
        %632 = vmatmul.mubr.f32.gmra.mrb[0].mxu0 %v309
        %v633 = vpop.f32.mrb[0].mxu0
        %v634 = vadd.f32 %v484, %v633
        %v635 = vpop.f32.mrb[0].mxu0
        %v636 = vadd.f32 %v488, %v635
        %637 = vmatprep.mubr.f32.mxu0 %v312
        %638 = vmatmul.mubr.f32.gmra.mrb[0].mxu0 %v311
        %v639 = vpop.f32.mrb[0].mxu0
        %v640 = vadd.f32 %v484, %v639
        %v641 = vpop.f32.mrb[0].mxu0
        %v642 = vadd.f32 %v488, %v641
        %643 = vmatprep.mubr.f32.mxu0 %v314
        %644 = vmatmul.mubr.f32.gmra.mrb[0].mxu0 %v313
        %v645 = vpop.f32.mrb[0].mxu0
        %v646 = vadd.f32 %v484, %v645
        %v647 = vpop.f32.mrb[0].mxu0
        %v648 = vadd.f32 %v488, %v647
        %649 = vmatprep.mubr.f32.mxu0 %v316
        %650 = vmatmul.mubr.f32.gmra.mrb[0].mxu0 %v315
        %v651 = vpop.f32.mrb[0].mxu0
        %v652 = vadd.f32 %v484, %v651
        %v653 = vpop.f32.mrb[0].mxu0
        %v654 = vadd.f32 %v488, %v653
        %655 = vmatprep.mubr.f32.mxu0 %v318
        %656 = vmatmul.mubr.f32.gmra.mrb[0].mxu0 %v317
        %v657 = vpop.f32.mrb[0].mxu0
        %v658 = vadd.f32 %v484, %v657
        %v659 = vpop.f32.mrb[0].mxu0
        %v660 = vadd.f32 %v488, %v659
        %661 = vmatprep.mubr.f32.mxu0 %v320
        %662 = vmatmul.mubr.f32.gmra.mrb[0].mxu0 %v319
        %v663 = vpop.f32.mrb[0].mxu0
        %v664 = vadd.f32 %v484, %v663
        %v665 = vpop.f32.mrb[0].mxu0
        %v666 = vadd.f32 %v488, %v665
        %667 = vmatprep.mubr.f32.mxu0 %v322
        %668 = vmatmul.mubr.f32.gmra.mrb[0].mxu0 %v321
        %v669 = vpop.f32.mrb[0].mxu0
        %v670 = vadd.f32 %v484, %v669
        %v671 = vpop.f32.mrb[0].mxu0
        %v672 = vadd.f32 %v488, %v671
        %673 = vmatprep.mubr.f32.mxu0 %v324
        %674 = vmatmul.mubr.f32.gmra.mrb[0].mxu0 %v323
        %v675 = vpop.f32.mrb[0].mxu0
        %v676 = vadd.f32 %v484, %v675
        %v677 = vpop.f32.mrb[0].mxu0
        %v678 = vadd.f32 %v488, %v677
        %679 = vmatprep.mubr.f32.mxu0 %v326
        %680 = vmatmul.mubr.f32.gmra.mrb[0].mxu0 %v325
        %v681 = vpop.f32.mrb[0].mxu0
        %v682 = vadd.f32 %v484, %v681
        %v683 = vpop.f32.mrb[0].mxu0
        %v684 = vadd.f32 %v488, %v683
        %685 = vmatprep.mubr.f32.mxu0 %v328
        %686 = vmatmul.mubr.f32.gmra.mrb[0].mxu0 %v327
        %v687 = vpop.f32.mrb[0].mxu0
        %v688 = vadd.f32 %v484, %v687
        %v689 = vpop.f32.mrb[0].mxu0
        %v690 = vadd.f32 %v488, %v689
        %691 = vmatprep.mubr.f32.mxu0 %v330
        %692 = vmatmul.mubr.f32.gmra.mrb[0].mxu0 %v329
        %v693 = vpop.f32.mrb[0].mxu0
        %v694 = vadd.f32 %v484, %v693
        %v695 = vpop.f32.mrb[0].mxu0
        %v696 = vadd.f32 %v488, %v695
        %697 = vmatprep.mubr.f32.mxu0 %v332
        %698 = vmatmul.mubr.f32.gmra.mrb[0].mxu0 %v331
        %v699 = vpop.f32.mrb[0].mxu0
        %v700 = vadd.f32 %v484, %v699
        %v701 = vpop.f32.mrb[0].mxu0
        %v702 = vadd.f32 %v488, %v701
        %703 = vmatprep.mubr.f32.mxu0 %v334
        %704 = vmatmul.mubr.f32.gmra.mrb[0].mxu0 %v333
        %v705 = vpop.f32.mrb[0].mxu0
        %v706 = vadd.f32 %v484, %v705
        %v707 = vpop.f32.mrb[0].mxu0
        %v708 = vadd.f32 %v488, %v707
        %709 = vmatprep.mubr.f32.mxu0 %v336
        %710 = vmatmul.mubr.f32.gmra.mrb[0].mxu0 %v335
        %v711 = vpop.f32.mrb[0].mxu0
        %v712 = vadd.f32 %v484, %v711
        %v713 = vpop.f32.mrb[0].mxu0
        %v714 = vadd.f32 %v488, %v713
        %715 = vmatprep.mubr.f32.mxu0 %v338
        %716 = vmatmul.mubr.f32.gmra.mrb[0].mxu0 %v337
        %v717 = vpop.f32.mrb[0].mxu0
        %v718 = vadd.f32 %v484, %v717
        %v719 = vpop.f32.mrb[0].mxu0
        %v720 = vadd.f32 %v488, %v719
        %721 = vmatprep.mubr.f32.mxu0 %v340
        %722 = vmatmul.mubr.f32.gmra.mrb[0].mxu0 %v339
        %v723 = vpop.f32.mrb[0].mxu0
        %v724 = vadd.f32 %v484, %v723
        %v725 = vpop.f32.mrb[0].mxu0
        %v726 = vadd.f32 %v488, %v725
        %727 = vmatprep.mubr.f32.mxu0 %v342
        %728 = vmatmul.mubr.f32.gmra.mrb[0].mxu0 %v341
        %v729 = vpop.f32.mrb[0].mxu0
        %v730 = vadd.f32 %v484, %v729
        %v731 = vpop.f32.mrb[0].mxu0
        %v732 = vadd.f32 %v488, %v731
        %733 = vmatprep.mubr.f32.mxu0 %v344
        %734 = vmatmul.mubr.f32.gmra.mrb[0].mxu0 %v343
        %v735 = vpop.f32.mrb[0].mxu0
        %v736 = vadd.f32 %v484, %v735
        %v737 = vpop.f32.mrb[0].mxu0
        %v738 = vadd.f32 %v488, %v737
        %739 = vmatprep.mubr.f32.mxu0 %v346
        %740 = vmatmul.mubr.f32.gmra.mrb[0].mxu0 %v345
        %v741 = vpop.f32.mrb[0].mxu0
        %v742 = vadd.f32 %v484, %v741
        %v743 = vpop.f32.mrb[0].mxu0
        %v744 = vadd.f32 %v488, %v743
        %745 = vmatprep.mubr.f32.mxu0 %v348
        %746 = vmatmul.mubr.f32.gmra.mrb[0].mxu0 %v347
        %v747 = vpop.f32.mrb[0].mxu0
        %v748 = vadd.f32 %v484, %v747
        %v749 = vpop.f32.mrb[0].mxu0
        %v750 = vadd.f32 %v488, %v749
        %751 = vmatprep.mubr.f32.mxu0 %v350
        %752 = vmatmul.mubr.f32.gmra.mrb[0].mxu0 %v349
        %v753 = vpop.f32.mrb[0].mxu0
        %v754 = vadd.f32 %v484, %v753
        %v755 = vpop.f32.mrb[0].mxu0
        %v756 = vadd.f32 %v488, %v755
        %757 = vdwg.mxu0
        %758 = vmatprep.subr.mxu0 %v354
        %759 = vmatpush1.msra.mxu0 %v353
        %760 = vmatprep.subr.mxu0 %v358
        %761 = vmatpush1.msra.mxu0 %v357
        %762 = vmatprep.subr.mxu0 %v362
        %763 = vmatpush1.msra.mxu0 %v361
        %764 = vmatprep.subr.mxu0 %v366
        %765 = vmatpush1.msra.mxu0 %v365
        %766 = vmatprep.subr.mxu0 %v370
        %767 = vmatpush1.msra.mxu0 %v369
        %768 = vmatprep.subr.mxu0 %v374
        %769 = vmatpush1.msra.mxu0 %v373
        %770 = vmatprep.subr.mxu0 %v378
        %771 = vmatpush1.msra.mxu0 %v377
        %772 = vmatprep.subr.mxu0 %v382
        %773 = vmatpush1.msra.mxu0 %v381
        %774 = vmatprep.subr.mxu0 %v386
        %775 = vmatpush1.msra.mxu0 %v385
        %776 = vmatprep.subr.mxu0 %v390
        %777 = vmatpush1.msra.mxu0 %v389
        %778 = vmatprep.subr.mxu0 %v394
        %779 = vmatpush1.msra.mxu0 %v393
        %780 = vmatprep.subr.mxu0 %v398
        %781 = vmatpush1.msra.mxu0 %v397
        %782 = vmatprep.subr.mxu0 %v402
        %783 = vmatpush1.msra.mxu0 %v401
        %784 = vmatprep.subr.mxu0 %v406
        %785 = vmatpush1.msra.mxu0 %v405
        %786 = vmatprep.subr.mxu0 %v410
        %787 = vmatpush1.msra.mxu0 %v409
        %788 = vmatprep.subr.mxu0 %v414
        %789 = vmatpush1.msra.mxu0 %v413
        %790 = vmatprep.subr.mxu0 %v418
        %791 = vmatpush1.msra.mxu0 %v417
        %792 = vmatprep.subr.mxu0 %v422
        %793 = vmatpush1.msra.mxu0 %v421
        %794 = vmatprep.subr.mxu0 %v426
        %795 = vmatpush1.msra.mxu0 %v425
        %796 = vmatprep.subr.mxu0 %v430
        %797 = vmatpush1.msra.mxu0 %v429
        %798 = vmatprep.subr.mxu0 %v434
        %799 = vmatpush1.msra.mxu0 %v433
        %800 = vmatprep.subr.mxu0 %v438
        %801 = vmatpush1.msra.mxu0 %v437
        %802 = vmatprep.subr.mxu0 %v442
        %803 = vmatpush1.msra.mxu0 %v441
        %804 = vmatprep.subr.mxu0 %v446
        %805 = vmatpush1.msra.mxu0 %v445
        %806 = vmatprep.subr.mxu0 %v450
        %807 = vmatpush1.msra.mxu0 %v449
        %808 = vmatprep.subr.mxu0 %v454
        %809 = vmatpush1.msra.mxu0 %v453
        %810 = vmatprep.subr.mxu0 %v458
        %811 = vmatpush1.msra.mxu0 %v457
        %812 = vmatprep.subr.mxu0 %v462
        %813 = vmatpush1.msra.mxu0 %v461
        %814 = vmatprep.subr.mxu0 %v466
        %815 = vmatpush1.msra.mxu0 %v465
        %816 = vmatprep.subr.mxu0 %v470
        %817 = vmatpush1.msra.mxu0 %v469
        %818 = vmatprep.subr.mxu0 %v474
        %819 = vmatpush1.msra.mxu0 %v473
        %820 = vmatprep.subr.mxu0 %v478
        %821 = vmatpush1.msra.mxu0 %v477
        %822 = vmatprep.mubr.f32.mxu0 %v288
        %823 = vmatmul.mubr.f32.gmra.mrb[0].mxu0 %v287
        %v824 = vpop.f32.mrb[0].mxu0
        %v825 = vadd.f32 %v492, %v824
        %v826 = vpop.f32.mrb[0].mxu0
        %v827 = vadd.f32 %v496, %v826
        %828 = vmatprep.mubr.f32.mxu0 %v290
        %829 = vmatmul.mubr.f32.gmra.mrb[0].mxu0 %v289
        %v830 = vpop.f32.mrb[0].mxu0
        %v831 = vadd.f32 %v492, %v830
        %v832 = vpop.f32.mrb[0].mxu0
        %v833 = vadd.f32 %v496, %v832
        %834 = vmatprep.mubr.f32.mxu0 %v292
        %835 = vmatmul.mubr.f32.gmra.mrb[0].mxu0 %v291
        %v836 = vpop.f32.mrb[0].mxu0
        %v837 = vadd.f32 %v492, %v836
        %v838 = vpop.f32.mrb[0].mxu0
        %v839 = vadd.f32 %v496, %v838
        %840 = vmatprep.mubr.f32.mxu0 %v294
        %841 = vmatmul.mubr.f32.gmra.mrb[0].mxu0 %v293
        %v842 = vpop.f32.mrb[0].mxu0
        %v843 = vadd.f32 %v492, %v842
        %v844 = vpop.f32.mrb[0].mxu0
        %v845 = vadd.f32 %v496, %v844
        %846 = vmatprep.mubr.f32.mxu0 %v296
        %847 = vmatmul.mubr.f32.gmra.mrb[0].mxu0 %v295
        %v848 = vpop.f32.mrb[0].mxu0
        %v849 = vadd.f32 %v492, %v848
        %v850 = vpop.f32.mrb[0].mxu0
        %v851 = vadd.f32 %v496, %v850
        %852 = vmatprep.mubr.f32.mxu0 %v298
        %853 = vmatmul.mubr.f32.gmra.mrb[0].mxu0 %v297
        %v854 = vpop.f32.mrb[0].mxu0
        %v855 = vadd.f32 %v492, %v854
        %v856 = vpop.f32.mrb[0].mxu0
        %v857 = vadd.f32 %v496, %v856
        %858 = vmatprep.mubr.f32.mxu0 %v300
        %859 = vmatmul.mubr.f32.gmra.mrb[0].mxu0 %v299
        %v860 = vpop.f32.mrb[0].mxu0
        %v861 = vadd.f32 %v492, %v860
        %v862 = vpop.f32.mrb[0].mxu0
        %v863 = vadd.f32 %v496, %v862
        %864 = vmatprep.mubr.f32.mxu0 %v302
        %865 = vmatmul.mubr.f32.gmra.mrb[0].mxu0 %v301
        %v866 = vpop.f32.mrb[0].mxu0
        %v867 = vadd.f32 %v492, %v866
        %v868 = vpop.f32.mrb[0].mxu0
        %v869 = vadd.f32 %v496, %v868
        %870 = vmatprep.mubr.f32.mxu0 %v304
        %871 = vmatmul.mubr.f32.gmra.mrb[0].mxu0 %v303
        %v872 = vpop.f32.mrb[0].mxu0
        %v873 = vadd.f32 %v492, %v872
        %v874 = vpop.f32.mrb[0].mxu0
        %v875 = vadd.f32 %v496, %v874
        %876 = vmatprep.mubr.f32.mxu0 %v306
        %877 = vmatmul.mubr.f32.gmra.mrb[0].mxu0 %v305
        %v878 = vpop.f32.mrb[0].mxu0
        %v879 = vadd.f32 %v492, %v878
        %v880 = vpop.f32.mrb[0].mxu0
        %v881 = vadd.f32 %v496, %v880
        %882 = vmatprep.mubr.f32.mxu0 %v308
        %883 = vmatmul.mubr.f32.gmra.mrb[0].mxu0 %v307
        %v884 = vpop.f32.mrb[0].mxu0
        %v885 = vadd.f32 %v492, %v884
        %v886 = vpop.f32.mrb[0].mxu0
        %v887 = vadd.f32 %v496, %v886
        %888 = vmatprep.mubr.f32.mxu0 %v310
        %889 = vmatmul.mubr.f32.gmra.mrb[0].mxu0 %v309
        %v890 = vpop.f32.mrb[0].mxu0
        %v891 = vadd.f32 %v492, %v890
        %v892 = vpop.f32.mrb[0].mxu0
        %v893 = vadd.f32 %v496, %v892
        %894 = vmatprep.mubr.f32.mxu0 %v312
        %895 = vmatmul.mubr.f32.gmra.mrb[0].mxu0 %v311
        %v896 = vpop.f32.mrb[0].mxu0
        %v897 = vadd.f32 %v492, %v896
        %v898 = vpop.f32.mrb[0].mxu0
        %v899 = vadd.f32 %v496, %v898
        %900 = vmatprep.mubr.f32.mxu0 %v314
        %901 = vmatmul.mubr.f32.gmra.mrb[0].mxu0 %v313
        %v902 = vpop.f32.mrb[0].mxu0
        %v903 = vadd.f32 %v492, %v902
        %v904 = vpop.f32.mrb[0].mxu0
        %v905 = vadd.f32 %v496, %v904
        %906 = vmatprep.mubr.f32.mxu0 %v316
        %907 = vmatmul.mubr.f32.gmra.mrb[0].mxu0 %v315
        %v908 = vpop.f32.mrb[0].mxu0
        %v909 = vadd.f32 %v492, %v908
        %v910 = vpop.f32.mrb[0].mxu0
        %v911 = vadd.f32 %v496, %v910
        %912 = vmatprep.mubr.f32.mxu0 %v318
        %913 = vmatmul.mubr.f32.gmra.mrb[0].mxu0 %v317
        %v914 = vpop.f32.mrb[0].mxu0
        %v915 = vadd.f32 %v492, %v914
        %v916 = vpop.f32.mrb[0].mxu0
        %v917 = vadd.f32 %v496, %v916
        %918 = vmatprep.mubr.f32.mxu0 %v320
        %919 = vmatmul.mubr.f32.gmra.mrb[0].mxu0 %v319
        %v920 = vpop.f32.mrb[0].mxu0
        %v921 = vadd.f32 %v492, %v920
        %v922 = vpop.f32.mrb[0].mxu0
        %v923 = vadd.f32 %v496, %v922
        %924 = vmatprep.mubr.f32.mxu0 %v322
        %925 = vmatmul.mubr.f32.gmra.mrb[0].mxu0 %v321
        %v926 = vpop.f32.mrb[0].mxu0
        %v927 = vadd.f32 %v492, %v926
        %v928 = vpop.f32.mrb[0].mxu0
        %v929 = vadd.f32 %v496, %v928
        %930 = vmatprep.mubr.f32.mxu0 %v324
        %931 = vmatmul.mubr.f32.gmra.mrb[0].mxu0 %v323
        %v932 = vpop.f32.mrb[0].mxu0
        %v933 = vadd.f32 %v492, %v932
        %v934 = vpop.f32.mrb[0].mxu0
        %v935 = vadd.f32 %v496, %v934
        %936 = vmatprep.mubr.f32.mxu0 %v326
        %937 = vmatmul.mubr.f32.gmra.mrb[0].mxu0 %v325
        %v938 = vpop.f32.mrb[0].mxu0
        %v939 = vadd.f32 %v492, %v938
        %v940 = vpop.f32.mrb[0].mxu0
        %v941 = vadd.f32 %v496, %v940
        %942 = vmatprep.mubr.f32.mxu0 %v328
        %943 = vmatmul.mubr.f32.gmra.mrb[0].mxu0 %v327
        %v944 = vpop.f32.mrb[0].mxu0
        %v945 = vadd.f32 %v492, %v944
        %v946 = vpop.f32.mrb[0].mxu0
        %v947 = vadd.f32 %v496, %v946
        %948 = vmatprep.mubr.f32.mxu0 %v330
        %949 = vmatmul.mubr.f32.gmra.mrb[0].mxu0 %v329
        %v950 = vpop.f32.mrb[0].mxu0
        %v951 = vadd.f32 %v492, %v950
        %v952 = vpop.f32.mrb[0].mxu0
        %v953 = vadd.f32 %v496, %v952
        %954 = vmatprep.mubr.f32.mxu0 %v332
        %955 = vmatmul.mubr.f32.gmra.mrb[0].mxu0 %v331
        %v956 = vpop.f32.mrb[0].mxu0
        %v957 = vadd.f32 %v492, %v956
        %v958 = vpop.f32.mrb[0].mxu0
        %v959 = vadd.f32 %v496, %v958
        %960 = vmatprep.mubr.f32.mxu0 %v334
        %961 = vmatmul.mubr.f32.gmra.mrb[0].mxu0 %v333
        %v962 = vpop.f32.mrb[0].mxu0
        %v963 = vadd.f32 %v492, %v962
        %v964 = vpop.f32.mrb[0].mxu0
        %v965 = vadd.f32 %v496, %v964
        %966 = vmatprep.mubr.f32.mxu0 %v336
        %967 = vmatmul.mubr.f32.gmra.mrb[0].mxu0 %v335
        %v968 = vpop.f32.mrb[0].mxu0
        %v969 = vadd.f32 %v492, %v968
        %v970 = vpop.f32.mrb[0].mxu0
        %v971 = vadd.f32 %v496, %v970
        %972 = vmatprep.mubr.f32.mxu0 %v338
        %973 = vmatmul.mubr.f32.gmra.mrb[0].mxu0 %v337
        %v974 = vpop.f32.mrb[0].mxu0
        %v975 = vadd.f32 %v492, %v974
        %v976 = vpop.f32.mrb[0].mxu0
        %v977 = vadd.f32 %v496, %v976
        %978 = vmatprep.mubr.f32.mxu0 %v340
        %979 = vmatmul.mubr.f32.gmra.mrb[0].mxu0 %v339
        %v980 = vpop.f32.mrb[0].mxu0
        %v981 = vadd.f32 %v492, %v980
        %v982 = vpop.f32.mrb[0].mxu0
        %v983 = vadd.f32 %v496, %v982
        %984 = vmatprep.mubr.f32.mxu0 %v342
        %985 = vmatmul.mubr.f32.gmra.mrb[0].mxu0 %v341
        %v986 = vpop.f32.mrb[0].mxu0
        %v987 = vadd.f32 %v492, %v986
        %v988 = vpop.f32.mrb[0].mxu0
        %v989 = vadd.f32 %v496, %v988
        %990 = vmatprep.mubr.f32.mxu0 %v344
        %991 = vmatmul.mubr.f32.gmra.mrb[0].mxu0 %v343
        %v992 = vpop.f32.mrb[0].mxu0
        %v993 = vadd.f32 %v492, %v992
        %v994 = vpop.f32.mrb[0].mxu0
        %v995 = vadd.f32 %v496, %v994
        %996 = vmatprep.mubr.f32.mxu0 %v346
        %997 = vmatmul.mubr.f32.gmra.mrb[0].mxu0 %v345
        %v998 = vpop.f32.mrb[0].mxu0
        %v999 = vadd.f32 %v492, %v998
        %v1000 = vpop.f32.mrb[0].mxu0
        %v1001 = vadd.f32 %v496, %v1000
        %1002 = vmatprep.mubr.f32.mxu0 %v348
        %1003 = vmatmul.mubr.f32.gmra.mrb[0].mxu0 %v347
        %v1004 = vpop.f32.mrb[0].mxu0
        %v1005 = vadd.f32 %v492, %v1004
        %v1006 = vpop.f32.mrb[0].mxu0
        %v1007 = vadd.f32 %v496, %v1006
        %1008 = vmatprep.mubr.f32.mxu0 %v350
        %1009 = vmatmul.mubr.f32.gmra.mrb[0].mxu0 %v349
        %v1010 = vpop.f32.mrb[0].mxu0
        %v1011 = vadd.f32 %v492, %v1010
        %v1012 = vpop.f32.mrb[0].mxu0
        %v1013 = vadd.f32 %v496, %v1012
        %1014 = vdwg.mxu0
        %v1015 = vtanh.pop %v568
        %v1016 = vtanh.pop %v570
        %v1017 = vtanh.pop %v574
        %v1018 = vtanh.pop %v576
        %v1019 = vtanh.pop %v580
        %v1020 = vtanh.pop %v582
        %v1021 = vtanh.pop %v586
        %v1022 = vtanh.pop %v588
        %v1023 = vtanh.pop %v592
        %v1024 = vtanh.pop %v594
        %v1025 = vtanh.pop %v598
        %v1026 = vtanh.pop %v600
        %v1027 = vtanh.pop %v604
        %v1028 = vtanh.pop %v606
        %v1029 = vtanh.pop %v610
        %v1030 = vtanh.pop %v612
        %v1031 = vtanh.pop %v616
        %v1032 = vtanh.pop %v618
        %v1033 = vtanh.pop %v622
        %v1034 = vtanh.pop %v624
        %v1035 = vtanh.pop %v628
        %v1036 = vtanh.pop %v630
        %v1037 = vtanh.pop %v634
        %v1038 = vtanh.pop %v636
        %v1039 = vtanh.pop %v640
        %v1040 = vtanh.pop %v642
        %v1041 = vtanh.pop %v646
        %v1042 = vtanh.pop %v648
        %v1043 = vtanh.pop %v652
        %v1044 = vtanh.pop %v654
        %v1045 = vtanh.pop %v658
        %v1046 = vtanh.pop %v660
        %v1047 = vtanh.pop %v664
        %v1048 = vtanh.pop %v666
        %v1049 = vtanh.pop %v670
        %v1050 = vtanh.pop %v672
        %v1051 = vtanh.pop %v676
        %v1052 = vtanh.pop %v678
        %v1053 = vtanh.pop %v682
        %v1054 = vtanh.pop %v684
        %v1055 = vtanh.pop %v688
        %v1056 = vtanh.pop %v690
        %v1057 = vtanh.pop %v694
        %v1058 = vtanh.pop %v696
        %v1059 = vtanh.pop %v700
        %v1060 = vtanh.pop %v702
        %v1061 = vtanh.pop %v706
        %v1062 = vtanh.pop %v708
        %v1063 = vtanh.pop %v712
        %v1064 = vtanh.pop %v714
        %v1065 = vtanh.pop %v718
        %v1066 = vtanh.pop %v720
        %v1067 = vtanh.pop %v724
        %v1068 = vtanh.pop %v726
        %v1069 = vtanh.pop %v730
        %v1070 = vtanh.pop %v732
        %v1071 = vtanh.pop %v736
        %v1072 = vtanh.pop %v738
        %v1073 = vtanh.pop %v742
        %v1074 = vtanh.pop %v744
        %v1075 = vtanh.pop %v748
        %v1076 = vtanh.pop %v750
        %v1077 = vtanh.pop %v754
        %v1078 = vtanh.pop %v756
        %v1079 = vsub.f32 0.0, %v825
        %v1080 = vsub.f32 0.0, %v827
        %v1081 = vsub.f32 0.0, %v831
        %v1082 = vsub.f32 0.0, %v833
        %v1083 = vsub.f32 0.0, %v837
        %v1084 = vsub.f32 0.0, %v839
        %v1085 = vsub.f32 0.0, %v843
        %v1086 = vsub.f32 0.0, %v845
        %v1087 = vsub.f32 0.0, %v849
        %v1088 = vsub.f32 0.0, %v851
        %v1089 = vsub.f32 0.0, %v855
        %v1090 = vsub.f32 0.0, %v857
        %v1091 = vsub.f32 0.0, %v861
        %v1092 = vsub.f32 0.0, %v863
        %v1093 = vsub.f32 0.0, %v867
        %v1094 = vsub.f32 0.0, %v869
        %v1095 = vsub.f32 0.0, %v873
        %v1096 = vsub.f32 0.0, %v875
        %v1097 = vsub.f32 0.0, %v879
        %v1098 = vsub.f32 0.0, %v881
        %v1099 = vsub.f32 0.0, %v885
        %v1100 = vsub.f32 0.0, %v887
        %v1101 = vsub.f32 0.0, %v891
        %v1102 = vsub.f32 0.0, %v893
        %v1103 = vsub.f32 0.0, %v897
        %v1104 = vsub.f32 0.0, %v899
        %v1105 = vsub.f32 0.0, %v903
        %v1106 = vsub.f32 0.0, %v905
        %v1107 = vsub.f32 0.0, %v909
        %v1108 = vsub.f32 0.0, %v911
        %v1109 = vsub.f32 0.0, %v915
        %v1110 = vsub.f32 0.0, %v917
        %v1111 = vsub.f32 0.0, %v921
        %v1112 = vsub.f32 0.0, %v923
        %v1113 = vsub.f32 0.0, %v927
        %v1114 = vsub.f32 0.0, %v929
        %v1115 = vsub.f32 0.0, %v933
        %v1116 = vsub.f32 0.0, %v935
        %v1117 = vsub.f32 0.0, %v939
        %v1118 = vsub.f32 0.0, %v941
        %v1119 = vsub.f32 0.0, %v945
        %v1120 = vsub.f32 0.0, %v947
        %v1121 = vsub.f32 0.0, %v951
        %v1122 = vsub.f32 0.0, %v953
        %v1123 = vsub.f32 0.0, %v957
        %v1124 = vsub.f32 0.0, %v959
        %v1125 = vsub.f32 0.0, %v963
        %v1126 = vsub.f32 0.0, %v965
        %v1127 = vsub.f32 0.0, %v969
        %v1128 = vsub.f32 0.0, %v971
        %v1129 = vsub.f32 0.0, %v975
        %v1130 = vsub.f32 0.0, %v977
        %v1131 = vsub.f32 0.0, %v981
        %v1132 = vsub.f32 0.0, %v983
        %v1133 = vsub.f32 0.0, %v987
        %v1134 = vsub.f32 0.0, %v989
        %v1135 = vsub.f32 0.0, %v993
        %v1136 = vsub.f32 0.0, %v995
        %v1137 = vsub.f32 0.0, %v999
        %v1138 = vsub.f32 0.0, %v1001
        %v1139 = vsub.f32 0.0, %v1005
        %v1140 = vsub.f32 0.0, %v1007
        %v1141 = vsub.f32 0.0, %v1011
        %v1142 = vsub.f32 0.0, %v1013
        %v1143 = vmul.f32 %v1079, 1.442695
        %v1144 = vpow.pop %v1143
        %v1145 = vmul.f32 %v1080, 1.442695
        %v1146 = vpow.pop %v1145
        %v1147 = vmul.f32 %v1081, 1.442695
        %v1148 = vpow.pop %v1147
        %v1149 = vmul.f32 %v1082, 1.442695
        %v1150 = vpow.pop %v1149
        %v1151 = vmul.f32 %v1083, 1.442695
        %v1152 = vpow.pop %v1151
        %v1153 = vmul.f32 %v1084, 1.442695
        %v1154 = vpow.pop %v1153
        %v1155 = vmul.f32 %v1085, 1.442695
        %v1156 = vpow.pop %v1155
        %v1157 = vmul.f32 %v1086, 1.442695
        %v1158 = vpow.pop %v1157
        %v1159 = vmul.f32 %v1087, 1.442695
        %v1160 = vpow.pop %v1159
        %v1161 = vmul.f32 %v1088, 1.442695
        %v1162 = vpow.pop %v1161
        %v1163 = vmul.f32 %v1089, 1.442695
        %v1164 = vpow.pop %v1163
        %v1165 = vmul.f32 %v1090, 1.442695
        %v1166 = vpow.pop %v1165
        %v1167 = vmul.f32 %v1091, 1.442695
        %v1168 = vpow.pop %v1167
        %v1169 = vmul.f32 %v1092, 1.442695
        %v1170 = vpow.pop %v1169
        %v1171 = vmul.f32 %v1093, 1.442695
        %v1172 = vpow.pop %v1171
        %v1173 = vmul.f32 %v1094, 1.442695
        %v1174 = vpow.pop %v1173
        %v1175 = vmul.f32 %v1095, 1.442695
        %v1176 = vpow.pop %v1175
        %v1177 = vmul.f32 %v1096, 1.442695
        %v1178 = vpow.pop %v1177
        %v1179 = vmul.f32 %v1097, 1.442695
        %v1180 = vpow.pop %v1179
        %v1181 = vmul.f32 %v1098, 1.442695
        %v1182 = vpow.pop %v1181
        %v1183 = vmul.f32 %v1099, 1.442695
        %v1184 = vpow.pop %v1183
        %v1185 = vmul.f32 %v1100, 1.442695
        %v1186 = vpow.pop %v1185
        %v1187 = vmul.f32 %v1101, 1.442695
        %v1188 = vpow.pop %v1187
        %v1189 = vmul.f32 %v1102, 1.442695
        %v1190 = vpow.pop %v1189
        %v1191 = vmul.f32 %v1103, 1.442695
        %v1192 = vpow.pop %v1191
        %v1193 = vmul.f32 %v1104, 1.442695
        %v1194 = vpow.pop %v1193
        %v1195 = vmul.f32 %v1105, 1.442695
        %v1196 = vpow.pop %v1195
        %v1197 = vmul.f32 %v1106, 1.442695
        %v1198 = vpow.pop %v1197
        %v1199 = vmul.f32 %v1107, 1.442695
        %v1200 = vpow.pop %v1199
        %v1201 = vmul.f32 %v1108, 1.442695
        %v1202 = vpow.pop %v1201
        %v1203 = vmul.f32 %v1109, 1.442695
        %v1204 = vpow.pop %v1203
        %v1205 = vmul.f32 %v1110, 1.442695
        %v1206 = vpow.pop %v1205
        %v1207 = vmul.f32 %v1111, 1.442695
        %v1208 = vpow.pop %v1207
        %v1209 = vmul.f32 %v1112, 1.442695
        %v1210 = vpow.pop %v1209
        %v1211 = vmul.f32 %v1113, 1.442695
        %v1212 = vpow.pop %v1211
        %v1213 = vmul.f32 %v1114, 1.442695
        %v1214 = vpow.pop %v1213
        %v1215 = vmul.f32 %v1115, 1.442695
        %v1216 = vpow.pop %v1215
        %v1217 = vmul.f32 %v1116, 1.442695
        %v1218 = vpow.pop %v1217
        %v1219 = vmul.f32 %v1117, 1.442695
        %v1220 = vpow.pop %v1219
        %v1221 = vmul.f32 %v1118, 1.442695
        %v1222 = vpow.pop %v1221
        %v1223 = vmul.f32 %v1119, 1.442695
        %v1224 = vpow.pop %v1223
        %v1225 = vmul.f32 %v1120, 1.442695
        %v1226 = vpow.pop %v1225
        %v1227 = vmul.f32 %v1121, 1.442695
        %v1228 = vpow.pop %v1227
        %v1229 = vmul.f32 %v1122, 1.442695
        %v1230 = vpow.pop %v1229
        %v1231 = vmul.f32 %v1123, 1.442695
        %v1232 = vpow.pop %v1231
        %v1233 = vmul.f32 %v1124, 1.442695
        %v1234 = vpow.pop %v1233
        %v1235 = vmul.f32 %v1125, 1.442695
        %v1236 = vpow.pop %v1235
        %v1237 = vmul.f32 %v1126, 1.442695
        %v1238 = vpow.pop %v1237
        %v1239 = vmul.f32 %v1127, 1.442695
        %v1240 = vpow.pop %v1239
        %v1241 = vmul.f32 %v1128, 1.442695
        %v1242 = vpow.pop %v1241
        %v1243 = vmul.f32 %v1129, 1.442695
        %v1244 = vpow.pop %v1243
        %v1245 = vmul.f32 %v1130, 1.442695
        %v1246 = vpow.pop %v1245
        %v1247 = vmul.f32 %v1131, 1.442695
        %v1248 = vpow.pop %v1247
        %v1249 = vmul.f32 %v1132, 1.442695
        %v1250 = vpow.pop %v1249
        %v1251 = vmul.f32 %v1133, 1.442695
        %v1252 = vpow.pop %v1251
        %v1253 = vmul.f32 %v1134, 1.442695
        %v1254 = vpow.pop %v1253
        %v1255 = vmul.f32 %v1135, 1.442695
        %v1256 = vpow.pop %v1255
        %v1257 = vmul.f32 %v1136, 1.442695
        %v1258 = vpow.pop %v1257
        %v1259 = vmul.f32 %v1137, 1.442695
        %v1260 = vpow.pop %v1259
        %v1261 = vmul.f32 %v1138, 1.442695
        %v1262 = vpow.pop %v1261
        %v1263 = vmul.f32 %v1139, 1.442695
        %v1264 = vpow.pop %v1263
        %v1265 = vmul.f32 %v1140, 1.442695
        %v1266 = vpow.pop %v1265
        %v1267 = vmul.f32 %v1141, 1.442695
        %v1268 = vpow.pop %v1267
        %v1269 = vmul.f32 %v1142, 1.442695
        %v1270 = vpow.pop %v1269
        %v1271 = vadd.f32 %v1144, 1.0
        %v1272 = vadd.f32 %v1146, 1.0
        %v1273 = vadd.f32 %v1148, 1.0
        %v1274 = vadd.f32 %v1150, 1.0
        %v1275 = vadd.f32 %v1152, 1.0
        %v1276 = vadd.f32 %v1154, 1.0
        %v1277 = vadd.f32 %v1156, 1.0
        %v1278 = vadd.f32 %v1158, 1.0
        %v1279 = vadd.f32 %v1160, 1.0
        %v1280 = vadd.f32 %v1162, 1.0
        %v1281 = vadd.f32 %v1164, 1.0
        %v1282 = vadd.f32 %v1166, 1.0
        %v1283 = vadd.f32 %v1168, 1.0
        %v1284 = vadd.f32 %v1170, 1.0
        %v1285 = vadd.f32 %v1172, 1.0
        %v1286 = vadd.f32 %v1174, 1.0
        %v1287 = vadd.f32 %v1176, 1.0
        %v1288 = vadd.f32 %v1178, 1.0
        %v1289 = vadd.f32 %v1180, 1.0
        %v1290 = vadd.f32 %v1182, 1.0
        %v1291 = vadd.f32 %v1184, 1.0
        %v1292 = vadd.f32 %v1186, 1.0
        %v1293 = vadd.f32 %v1188, 1.0
        %v1294 = vadd.f32 %v1190, 1.0
        %v1295 = vadd.f32 %v1192, 1.0
        %v1296 = vadd.f32 %v1194, 1.0
        %v1297 = vadd.f32 %v1196, 1.0
        %v1298 = vadd.f32 %v1198, 1.0
        %v1299 = vadd.f32 %v1200, 1.0
        %v1300 = vadd.f32 %v1202, 1.0
        %v1301 = vadd.f32 %v1204, 1.0
        %v1302 = vadd.f32 %v1206, 1.0
        %v1303 = vadd.f32 %v1208, 1.0
        %v1304 = vadd.f32 %v1210, 1.0
        %v1305 = vadd.f32 %v1212, 1.0
        %v1306 = vadd.f32 %v1214, 1.0
        %v1307 = vadd.f32 %v1216, 1.0
        %v1308 = vadd.f32 %v1218, 1.0
        %v1309 = vadd.f32 %v1220, 1.0
        %v1310 = vadd.f32 %v1222, 1.0
        %v1311 = vadd.f32 %v1224, 1.0
        %v1312 = vadd.f32 %v1226, 1.0
        %v1313 = vadd.f32 %v1228, 1.0
        %v1314 = vadd.f32 %v1230, 1.0
        %v1315 = vadd.f32 %v1232, 1.0
        %v1316 = vadd.f32 %v1234, 1.0
        %v1317 = vadd.f32 %v1236, 1.0
        %v1318 = vadd.f32 %v1238, 1.0
        %v1319 = vadd.f32 %v1240, 1.0
        %v1320 = vadd.f32 %v1242, 1.0
        %v1321 = vadd.f32 %v1244, 1.0
        %v1322 = vadd.f32 %v1246, 1.0
        %v1323 = vadd.f32 %v1248, 1.0
        %v1324 = vadd.f32 %v1250, 1.0
        %v1325 = vadd.f32 %v1252, 1.0
        %v1326 = vadd.f32 %v1254, 1.0
        %v1327 = vadd.f32 %v1256, 1.0
        %v1328 = vadd.f32 %v1258, 1.0
        %v1329 = vadd.f32 %v1260, 1.0
        %v1330 = vadd.f32 %v1262, 1.0
        %v1331 = vadd.f32 %v1264, 1.0
        %v1332 = vadd.f32 %v1266, 1.0
        %v1333 = vadd.f32 %v1268, 1.0
        %v1334 = vadd.f32 %v1270, 1.0
        %v1335 = vrcp.pop %v1271
        %v1336 = vmul.f32 1.0, %v1335
        %v1337 = vrcp.pop %v1272
        %v1338 = vmul.f32 1.0, %v1337
        %v1339 = vrcp.pop %v1273
        %v1340 = vmul.f32 1.0, %v1339
        %v1341 = vrcp.pop %v1274
        %v1342 = vmul.f32 1.0, %v1341
        %v1343 = vrcp.pop %v1275
        %v1344 = vmul.f32 1.0, %v1343
        %v1345 = vrcp.pop %v1276
        %v1346 = vmul.f32 1.0, %v1345
        %v1347 = vrcp.pop %v1277
        %v1348 = vmul.f32 1.0, %v1347
        %v1349 = vrcp.pop %v1278
        %v1350 = vmul.f32 1.0, %v1349
        %v1351 = vrcp.pop %v1279
        %v1352 = vmul.f32 1.0, %v1351
        %v1353 = vrcp.pop %v1280
        %v1354 = vmul.f32 1.0, %v1353
        %v1355 = vrcp.pop %v1281
        %v1356 = vmul.f32 1.0, %v1355
        %v1357 = vrcp.pop %v1282
        %v1358 = vmul.f32 1.0, %v1357
        %v1359 = vrcp.pop %v1283
        %v1360 = vmul.f32 1.0, %v1359
        %v1361 = vrcp.pop %v1284
        %v1362 = vmul.f32 1.0, %v1361
        %v1363 = vrcp.pop %v1285
        %v1364 = vmul.f32 1.0, %v1363
        %v1365 = vrcp.pop %v1286
        %v1366 = vmul.f32 1.0, %v1365
        %v1367 = vrcp.pop %v1287
        %v1368 = vmul.f32 1.0, %v1367
        %v1369 = vrcp.pop %v1288
        %v1370 = vmul.f32 1.0, %v1369
        %v1371 = vrcp.pop %v1289
        %v1372 = vmul.f32 1.0, %v1371
        %v1373 = vrcp.pop %v1290
        %v1374 = vmul.f32 1.0, %v1373
        %v1375 = vrcp.pop %v1291
        %v1376 = vmul.f32 1.0, %v1375
        %v1377 = vrcp.pop %v1292
        %v1378 = vmul.f32 1.0, %v1377
        %v1379 = vrcp.pop %v1293
        %v1380 = vmul.f32 1.0, %v1379
        %v1381 = vrcp.pop %v1294
        %v1382 = vmul.f32 1.0, %v1381
        %v1383 = vrcp.pop %v1295
        %v1384 = vmul.f32 1.0, %v1383
        %v1385 = vrcp.pop %v1296
        %v1386 = vmul.f32 1.0, %v1385
        %v1387 = vrcp.pop %v1297
        %v1388 = vmul.f32 1.0, %v1387
        %v1389 = vrcp.pop %v1298
        %v1390 = vmul.f32 1.0, %v1389
        %v1391 = vrcp.pop %v1299
        %v1392 = vmul.f32 1.0, %v1391
        %v1393 = vrcp.pop %v1300
        %v1394 = vmul.f32 1.0, %v1393
        %v1395 = vrcp.pop %v1301
        %v1396 = vmul.f32 1.0, %v1395
        %v1397 = vrcp.pop %v1302
        %v1398 = vmul.f32 1.0, %v1397
        %v1399 = vrcp.pop %v1303
        %v1400 = vmul.f32 1.0, %v1399
        %v1401 = vrcp.pop %v1304
        %v1402 = vmul.f32 1.0, %v1401
        %v1403 = vrcp.pop %v1305
        %v1404 = vmul.f32 1.0, %v1403
        %v1405 = vrcp.pop %v1306
        %v1406 = vmul.f32 1.0, %v1405
        %v1407 = vrcp.pop %v1307
        %v1408 = vmul.f32 1.0, %v1407
        %v1409 = vrcp.pop %v1308
        %v1410 = vmul.f32 1.0, %v1409
        %v1411 = vrcp.pop %v1309
        %v1412 = vmul.f32 1.0, %v1411
        %v1413 = vrcp.pop %v1310
        %v1414 = vmul.f32 1.0, %v1413
        %v1415 = vrcp.pop %v1311
        %v1416 = vmul.f32 1.0, %v1415
        %v1417 = vrcp.pop %v1312
        %v1418 = vmul.f32 1.0, %v1417
        %v1419 = vrcp.pop %v1313
        %v1420 = vmul.f32 1.0, %v1419
        %v1421 = vrcp.pop %v1314
        %v1422 = vmul.f32 1.0, %v1421
        %v1423 = vrcp.pop %v1315
        %v1424 = vmul.f32 1.0, %v1423
        %v1425 = vrcp.pop %v1316
        %v1426 = vmul.f32 1.0, %v1425
        %v1427 = vrcp.pop %v1317
        %v1428 = vmul.f32 1.0, %v1427
        %v1429 = vrcp.pop %v1318
        %v1430 = vmul.f32 1.0, %v1429
        %v1431 = vrcp.pop %v1319
        %v1432 = vmul.f32 1.0, %v1431
        %v1433 = vrcp.pop %v1320
        %v1434 = vmul.f32 1.0, %v1433
        %v1435 = vrcp.pop %v1321
        %v1436 = vmul.f32 1.0, %v1435
        %v1437 = vrcp.pop %v1322
        %v1438 = vmul.f32 1.0, %v1437
        %v1439 = vrcp.pop %v1323
        %v1440 = vmul.f32 1.0, %v1439
        %v1441 = vrcp.pop %v1324
        %v1442 = vmul.f32 1.0, %v1441
        %v1443 = vrcp.pop %v1325
        %v1444 = vmul.f32 1.0, %v1443
        %v1445 = vrcp.pop %v1326
        %v1446 = vmul.f32 1.0, %v1445
        %v1447 = vrcp.pop %v1327
        %v1448 = vmul.f32 1.0, %v1447
        %v1449 = vrcp.pop %v1328
        %v1450 = vmul.f32 1.0, %v1449
        %v1451 = vrcp.pop %v1329
        %v1452 = vmul.f32 1.0, %v1451
        %v1453 = vrcp.pop %v1330
        %v1454 = vmul.f32 1.0, %v1453
        %v1455 = vrcp.pop %v1331
        %v1456 = vmul.f32 1.0, %v1455
        %v1457 = vrcp.pop %v1332
        %v1458 = vmul.f32 1.0, %v1457
        %v1459 = vrcp.pop %v1333
        %v1460 = vmul.f32 1.0, %v1459
        %v1461 = vrcp.pop %v1334
        %v1462 = vmul.f32 1.0, %v1461
        %v1463 = vmul.f32 %v1015, %v1336
        %v1464 = vmul.f32 %v1016, %v1338
        %v1465 = vmul.f32 %v1017, %v1340
        %v1466 = vmul.f32 %v1018, %v1342
        %v1467 = vmul.f32 %v1019, %v1344
        %v1468 = vmul.f32 %v1020, %v1346
        %v1469 = vmul.f32 %v1021, %v1348
        %v1470 = vmul.f32 %v1022, %v1350
        %v1471 = vmul.f32 %v1023, %v1352
        %v1472 = vmul.f32 %v1024, %v1354
        %v1473 = vmul.f32 %v1025, %v1356
        %v1474 = vmul.f32 %v1026, %v1358
        %v1475 = vmul.f32 %v1027, %v1360
        %v1476 = vmul.f32 %v1028, %v1362
        %v1477 = vmul.f32 %v1029, %v1364
        %v1478 = vmul.f32 %v1030, %v1366
        %v1479 = vmul.f32 %v1031, %v1368
        %v1480 = vmul.f32 %v1032, %v1370
        %v1481 = vmul.f32 %v1033, %v1372
        %v1482 = vmul.f32 %v1034, %v1374
        %v1483 = vmul.f32 %v1035, %v1376
        %v1484 = vmul.f32 %v1036, %v1378
        %v1485 = vmul.f32 %v1037, %v1380
        %v1486 = vmul.f32 %v1038, %v1382
        %v1487 = vmul.f32 %v1039, %v1384
        %v1488 = vmul.f32 %v1040, %v1386
        %v1489 = vmul.f32 %v1041, %v1388
        %v1490 = vmul.f32 %v1042, %v1390
        %v1491 = vmul.f32 %v1043, %v1392
        %v1492 = vmul.f32 %v1044, %v1394
        %v1493 = vmul.f32 %v1045, %v1396
        %v1494 = vmul.f32 %v1046, %v1398
        %v1495 = vmul.f32 %v1047, %v1400
        %v1496 = vmul.f32 %v1048, %v1402
        %v1497 = vmul.f32 %v1049, %v1404
        %v1498 = vmul.f32 %v1050, %v1406
        %v1499 = vmul.f32 %v1051, %v1408
        %v1500 = vmul.f32 %v1052, %v1410
        %v1501 = vmul.f32 %v1053, %v1412
        %v1502 = vmul.f32 %v1054, %v1414
        %v1503 = vmul.f32 %v1055, %v1416
        %v1504 = vmul.f32 %v1056, %v1418
        %v1505 = vmul.f32 %v1057, %v1420
        %v1506 = vmul.f32 %v1058, %v1422
        %v1507 = vmul.f32 %v1059, %v1424
        %v1508 = vmul.f32 %v1060, %v1426
        %v1509 = vmul.f32 %v1061, %v1428
        %v1510 = vmul.f32 %v1062, %v1430
        %v1511 = vmul.f32 %v1063, %v1432
        %v1512 = vmul.f32 %v1064, %v1434
        %v1513 = vmul.f32 %v1065, %v1436
        %v1514 = vmul.f32 %v1066, %v1438
        %v1515 = vmul.f32 %v1067, %v1440
        %v1516 = vmul.f32 %v1068, %v1442
        %v1517 = vmul.f32 %v1069, %v1444
        %v1518 = vmul.f32 %v1070, %v1446
        %v1519 = vmul.f32 %v1071, %v1448
        %v1520 = vmul.f32 %v1072, %v1450
        %v1521 = vmul.f32 %v1073, %v1452
        %v1522 = vmul.f32 %v1074, %v1454
        %v1523 = vmul.f32 %v1075, %v1456
        %v1524 = vmul.f32 %v1076, %v1458
        %v1525 = vmul.f32 %v1077, %v1460
        %v1526 = vmul.f32 %v1078, %v1462
        %v1527 = vld [vmem:[#allocation6] sm:$0xff]
        %v1528 = vld [vmem:[#allocation6 + $0x8] sm:$0xff]
        %v1529 = vld [vmem:[#allocation6 + $0x10] sm:$0xff]
        %v1530 = vld [vmem:[#allocation6 + $0x18] sm:$0xff]
        %v1531 = vld [vmem:[#allocation6 + $0x20] sm:$0xff]
        %v1532 = vld [vmem:[#allocation6 + $0x28] sm:$0xff]
        %v1533 = vld [vmem:[#allocation6 + $0x30] sm:$0xff]
        %v1534 = vld [vmem:[#allocation6 + $0x38] sm:$0xff]
        %v1535 = vld [vmem:[#allocation6 + $0x40] sm:$0xff]
        %v1536 = vld [vmem:[#allocation6 + $0x48] sm:$0xff]
        %v1537 = vld [vmem:[#allocation6 + $0x50] sm:$0xff]
        %v1538 = vld [vmem:[#allocation6 + $0x58] sm:$0xff]
        %v1539 = vld [vmem:[#allocation6 + $0x60] sm:$0xff]
        %v1540 = vld [vmem:[#allocation6 + $0x68] sm:$0xff]
        %v1541 = vld [vmem:[#allocation6 + $0x70] sm:$0xff]
        %v1542 = vld [vmem:[#allocation6 + $0x78] sm:$0xff]
        %v1543 = vld [vmem:[#allocation6 + $0x80] sm:$0xff]
        %v1544 = vld [vmem:[#allocation6 + $0x88] sm:$0xff]
        %v1545 = vld [vmem:[#allocation6 + $0x90] sm:$0xff]
        %v1546 = vld [vmem:[#allocation6 + $0x98] sm:$0xff]
        %v1547 = vld [vmem:[#allocation6 + $0xa0] sm:$0xff]
        %v1548 = vld [vmem:[#allocation6 + $0xa8] sm:$0xff]
        %v1549 = vld [vmem:[#allocation6 + $0xb0] sm:$0xff]
        %v1550 = vld [vmem:[#allocation6 + $0xb8] sm:$0xff]
        %v1551 = vld [vmem:[#allocation6 + $0xc0] sm:$0xff]
        %v1552 = vld [vmem:[#allocation6 + $0xc8] sm:$0xff]
        %v1553 = vld [vmem:[#allocation6 + $0xd0] sm:$0xff]
        %v1554 = vld [vmem:[#allocation6 + $0xd8] sm:$0xff]
        %v1555 = vld [vmem:[#allocation6 + $0xe0] sm:$0xff]
        %v1556 = vld [vmem:[#allocation6 + $0xe8] sm:$0xff]
        %v1557 = vld [vmem:[#allocation6 + $0xf0] sm:$0xff]
        %v1558 = vld [vmem:[#allocation6 + $0xf8] sm:$0xff]
        %v1559 = vld [vmem:[%s4] sm:$0x1]
        %v1561 = vlaneseq
        %v1562 = vshrl.u32 %v1561, 7
        %v1563 = vsub.s32 0, %v1562
        %v1564 = vrot.slane %v1559, %v1563
        %1566 = vmatprep.subr.mxu0 0.0
        %1567 = vmatpush1.msra.mxu0 %v1527
        %1568 = vmatprep.subr.mxu0 0.0
        %1569 = vmatpush1.msra.mxu0 %v1528
        %1570 = vmatprep.subr.mxu0 0.0
        %1571 = vmatpush1.msra.mxu0 %v1529
        %1572 = vmatprep.subr.mxu0 0.0
        %1573 = vmatpush1.msra.mxu0 %v1530
        %1574 = vmatprep.subr.mxu0 0.0
        %1575 = vmatpush1.msra.mxu0 %v1531
        %1576 = vmatprep.subr.mxu0 0.0
        %1577 = vmatpush1.msra.mxu0 %v1532
        %1578 = vmatprep.subr.mxu0 0.0
        %1579 = vmatpush1.msra.mxu0 %v1533
        %1580 = vmatprep.subr.mxu0 0.0
        %1581 = vmatpush1.msra.mxu0 %v1534
        %1582 = vmatprep.subr.mxu0 0.0
        %1583 = vmatpush1.msra.mxu0 %v1535
        %1584 = vmatprep.subr.mxu0 0.0
        %1585 = vmatpush1.msra.mxu0 %v1536
        %1586 = vmatprep.subr.mxu0 0.0
        %1587 = vmatpush1.msra.mxu0 %v1537
        %1588 = vmatprep.subr.mxu0 0.0
        %1589 = vmatpush1.msra.mxu0 %v1538
        %1590 = vmatprep.subr.mxu0 0.0
        %1591 = vmatpush1.msra.mxu0 %v1539
        %1592 = vmatprep.subr.mxu0 0.0
        %1593 = vmatpush1.msra.mxu0 %v1540
        %1594 = vmatprep.subr.mxu0 0.0
        %1595 = vmatpush1.msra.mxu0 %v1541
        %1596 = vmatprep.subr.mxu0 0.0
        %1597 = vmatpush1.msra.mxu0 %v1542
        %1598 = vmatprep.subr.mxu0 0.0
        %1599 = vmatpush1.msra.mxu0 %v1543
        %1600 = vmatprep.subr.mxu0 0.0
        %1601 = vmatpush1.msra.mxu0 %v1544
        %1602 = vmatprep.subr.mxu0 0.0
        %1603 = vmatpush1.msra.mxu0 %v1545
        %1604 = vmatprep.subr.mxu0 0.0
        %1605 = vmatpush1.msra.mxu0 %v1546
        %1606 = vmatprep.subr.mxu0 0.0
        %1607 = vmatpush1.msra.mxu0 %v1547
        %1608 = vmatprep.subr.mxu0 0.0
        %1609 = vmatpush1.msra.mxu0 %v1548
        %1610 = vmatprep.subr.mxu0 0.0
        %1611 = vmatpush1.msra.mxu0 %v1549
        %1612 = vmatprep.subr.mxu0 0.0
        %1613 = vmatpush1.msra.mxu0 %v1550
        %1614 = vmatprep.subr.mxu0 0.0
        %1615 = vmatpush1.msra.mxu0 %v1551
        %1616 = vmatprep.subr.mxu0 0.0
        %1617 = vmatpush1.msra.mxu0 %v1552
        %1618 = vmatprep.subr.mxu0 0.0
        %1619 = vmatpush1.msra.mxu0 %v1553
        %1620 = vmatprep.subr.mxu0 0.0
        %1621 = vmatpush1.msra.mxu0 %v1554
        %1622 = vmatprep.subr.mxu0 0.0
        %1623 = vmatpush1.msra.mxu0 %v1555
        %1624 = vmatprep.subr.mxu0 0.0
        %1625 = vmatpush1.msra.mxu0 %v1556
        %1626 = vmatprep.subr.mxu0 0.0
        %1627 = vmatpush1.msra.mxu0 %v1557
        %1628 = vmatprep.subr.mxu0 0.0
        %1629 = vmatpush1.msra.mxu0 %v1558
        %1630 = vmatprep.mubr.f32.mxu0 %v1464
        %1631 = vmatmul.mubr.f32.gmra.mrb[0].mxu0 %v1463
        %v1632 = vpop.f32.mrb[0].mxu0
        %v1633 = vadd.f32 %v1564, %v1632
        %v1634 = vpop.f32.mrb[0].mxu0
        %1635 = vmatprep.mubr.f32.mxu0 %v1466
        %1636 = vmatmul.mubr.f32.gmra.mrb[0].mxu0 %v1465
        %v1637 = vpop.f32.mrb[0].mxu0
        %v1638 = vadd.f32 %v1564, %v1637
        %v1639 = vpop.f32.mrb[0].mxu0
        %1640 = vmatprep.mubr.f32.mxu0 %v1468
        %1641 = vmatmul.mubr.f32.gmra.mrb[0].mxu0 %v1467
        %v1642 = vpop.f32.mrb[0].mxu0
        %v1643 = vadd.f32 %v1564, %v1642
        %v1644 = vpop.f32.mrb[0].mxu0
        %1645 = vmatprep.mubr.f32.mxu0 %v1470
        %1646 = vmatmul.mubr.f32.gmra.mrb[0].mxu0 %v1469
        %v1647 = vpop.f32.mrb[0].mxu0
        %v1648 = vadd.f32 %v1564, %v1647
        %v1649 = vpop.f32.mrb[0].mxu0
        %1650 = vmatprep.mubr.f32.mxu0 %v1472
        %1651 = vmatmul.mubr.f32.gmra.mrb[0].mxu0 %v1471
        %v1652 = vpop.f32.mrb[0].mxu0
        %v1653 = vadd.f32 %v1564, %v1652
        %v1654 = vpop.f32.mrb[0].mxu0
        %1655 = vmatprep.mubr.f32.mxu0 %v1474
        %1656 = vmatmul.mubr.f32.gmra.mrb[0].mxu0 %v1473
        %v1657 = vpop.f32.mrb[0].mxu0
        %v1658 = vadd.f32 %v1564, %v1657
        %v1659 = vpop.f32.mrb[0].mxu0
        %1660 = vmatprep.mubr.f32.mxu0 %v1476
        %1661 = vmatmul.mubr.f32.gmra.mrb[0].mxu0 %v1475
        %v1662 = vpop.f32.mrb[0].mxu0
        %v1663 = vadd.f32 %v1564, %v1662
        %v1664 = vpop.f32.mrb[0].mxu0
        %1665 = vmatprep.mubr.f32.mxu0 %v1478
        %1666 = vmatmul.mubr.f32.gmra.mrb[0].mxu0 %v1477
        %v1667 = vpop.f32.mrb[0].mxu0
        %v1668 = vadd.f32 %v1564, %v1667
        %v1669 = vpop.f32.mrb[0].mxu0
        %1670 = vmatprep.mubr.f32.mxu0 %v1480
        %1671 = vmatmul.mubr.f32.gmra.mrb[0].mxu0 %v1479
        %v1672 = vpop.f32.mrb[0].mxu0
        %v1673 = vadd.f32 %v1564, %v1672
        %v1674 = vpop.f32.mrb[0].mxu0
        %1675 = vmatprep.mubr.f32.mxu0 %v1482
        %1676 = vmatmul.mubr.f32.gmra.mrb[0].mxu0 %v1481
        %v1677 = vpop.f32.mrb[0].mxu0
        %v1678 = vadd.f32 %v1564, %v1677
        %v1679 = vpop.f32.mrb[0].mxu0
        %1680 = vmatprep.mubr.f32.mxu0 %v1484
        %1681 = vmatmul.mubr.f32.gmra.mrb[0].mxu0 %v1483
        %v1682 = vpop.f32.mrb[0].mxu0
        %v1683 = vadd.f32 %v1564, %v1682
        %v1684 = vpop.f32.mrb[0].mxu0
        %1685 = vmatprep.mubr.f32.mxu0 %v1486
        %1686 = vmatmul.mubr.f32.gmra.mrb[0].mxu0 %v1485
        %v1687 = vpop.f32.mrb[0].mxu0
        %v1688 = vadd.f32 %v1564, %v1687
        %v1689 = vpop.f32.mrb[0].mxu0
        %1690 = vmatprep.mubr.f32.mxu0 %v1488
        %1691 = vmatmul.mubr.f32.gmra.mrb[0].mxu0 %v1487
        %v1692 = vpop.f32.mrb[0].mxu0
        %v1693 = vadd.f32 %v1564, %v1692
        %v1694 = vpop.f32.mrb[0].mxu0
        %1695 = vmatprep.mubr.f32.mxu0 %v1490
        %1696 = vmatmul.mubr.f32.gmra.mrb[0].mxu0 %v1489
        %v1697 = vpop.f32.mrb[0].mxu0
        %v1698 = vadd.f32 %v1564, %v1697
        %v1699 = vpop.f32.mrb[0].mxu0
        %1700 = vmatprep.mubr.f32.mxu0 %v1492
        %1701 = vmatmul.mubr.f32.gmra.mrb[0].mxu0 %v1491
        %v1702 = vpop.f32.mrb[0].mxu0
        %v1703 = vadd.f32 %v1564, %v1702
        %v1704 = vpop.f32.mrb[0].mxu0
        %1705 = vmatprep.mubr.f32.mxu0 %v1494
        %1706 = vmatmul.mubr.f32.gmra.mrb[0].mxu0 %v1493
        %v1707 = vpop.f32.mrb[0].mxu0
        %v1708 = vadd.f32 %v1564, %v1707
        %v1709 = vpop.f32.mrb[0].mxu0
        %1710 = vmatprep.mubr.f32.mxu0 %v1496
        %1711 = vmatmul.mubr.f32.gmra.mrb[0].mxu0 %v1495
        %v1712 = vpop.f32.mrb[0].mxu0
        %v1713 = vadd.f32 %v1564, %v1712
        %v1714 = vpop.f32.mrb[0].mxu0
        %1715 = vmatprep.mubr.f32.mxu0 %v1498
        %1716 = vmatmul.mubr.f32.gmra.mrb[0].mxu0 %v1497
        %v1717 = vpop.f32.mrb[0].mxu0
        %v1718 = vadd.f32 %v1564, %v1717
        %v1719 = vpop.f32.mrb[0].mxu0
        %1720 = vmatprep.mubr.f32.mxu0 %v1500
        %1721 = vmatmul.mubr.f32.gmra.mrb[0].mxu0 %v1499
        %v1722 = vpop.f32.mrb[0].mxu0
        %v1723 = vadd.f32 %v1564, %v1722
        %v1724 = vpop.f32.mrb[0].mxu0
        %1725 = vmatprep.mubr.f32.mxu0 %v1502
        %1726 = vmatmul.mubr.f32.gmra.mrb[0].mxu0 %v1501
        %v1727 = vpop.f32.mrb[0].mxu0
        %v1728 = vadd.f32 %v1564, %v1727
        %v1729 = vpop.f32.mrb[0].mxu0
        %1730 = vmatprep.mubr.f32.mxu0 %v1504
        %1731 = vmatmul.mubr.f32.gmra.mrb[0].mxu0 %v1503
        %v1732 = vpop.f32.mrb[0].mxu0
        %v1733 = vadd.f32 %v1564, %v1732
        %v1734 = vpop.f32.mrb[0].mxu0
        %1735 = vmatprep.mubr.f32.mxu0 %v1506
        %1736 = vmatmul.mubr.f32.gmra.mrb[0].mxu0 %v1505
        %v1737 = vpop.f32.mrb[0].mxu0
        %v1738 = vadd.f32 %v1564, %v1737
        %v1739 = vpop.f32.mrb[0].mxu0
        %1740 = vmatprep.mubr.f32.mxu0 %v1508
        %1741 = vmatmul.mubr.f32.gmra.mrb[0].mxu0 %v1507
        %v1742 = vpop.f32.mrb[0].mxu0
        %v1743 = vadd.f32 %v1564, %v1742
        %v1744 = vpop.f32.mrb[0].mxu0
        %1745 = vmatprep.mubr.f32.mxu0 %v1510
        %1746 = vmatmul.mubr.f32.gmra.mrb[0].mxu0 %v1509
        %v1747 = vpop.f32.mrb[0].mxu0
        %v1748 = vadd.f32 %v1564, %v1747
        %v1749 = vpop.f32.mrb[0].mxu0
        %1750 = vmatprep.mubr.f32.mxu0 %v1512
        %1751 = vmatmul.mubr.f32.gmra.mrb[0].mxu0 %v1511
        %v1752 = vpop.f32.mrb[0].mxu0
        %v1753 = vadd.f32 %v1564, %v1752
        %v1754 = vpop.f32.mrb[0].mxu0
        %1755 = vmatprep.mubr.f32.mxu0 %v1514
        %1756 = vmatmul.mubr.f32.gmra.mrb[0].mxu0 %v1513
        %v1757 = vpop.f32.mrb[0].mxu0
        %v1758 = vadd.f32 %v1564, %v1757
        %v1759 = vpop.f32.mrb[0].mxu0
        %1760 = vmatprep.mubr.f32.mxu0 %v1516
        %1761 = vmatmul.mubr.f32.gmra.mrb[0].mxu0 %v1515
        %v1762 = vpop.f32.mrb[0].mxu0
        %v1763 = vadd.f32 %v1564, %v1762
        %v1764 = vpop.f32.mrb[0].mxu0
        %1765 = vmatprep.mubr.f32.mxu0 %v1518
        %1766 = vmatmul.mubr.f32.gmra.mrb[0].mxu0 %v1517
        %v1767 = vpop.f32.mrb[0].mxu0
        %v1768 = vadd.f32 %v1564, %v1767
        %v1769 = vpop.f32.mrb[0].mxu0
        %1770 = vmatprep.mubr.f32.mxu0 %v1520
        %1771 = vmatmul.mubr.f32.gmra.mrb[0].mxu0 %v1519
        %v1772 = vpop.f32.mrb[0].mxu0
        %v1773 = vadd.f32 %v1564, %v1772
        %v1774 = vpop.f32.mrb[0].mxu0
        %1775 = vmatprep.mubr.f32.mxu0 %v1522
        %1776 = vmatmul.mubr.f32.gmra.mrb[0].mxu0 %v1521
        %v1777 = vpop.f32.mrb[0].mxu0
        %v1778 = vadd.f32 %v1564, %v1777
        %v1779 = vpop.f32.mrb[0].mxu0
        %1780 = vmatprep.mubr.f32.mxu0 %v1524
        %1781 = vmatmul.mubr.f32.gmra.mrb[0].mxu0 %v1523
        %v1782 = vpop.f32.mrb[0].mxu0
        %v1783 = vadd.f32 %v1564, %v1782
        %v1784 = vpop.f32.mrb[0].mxu0
        %1785 = vmatprep.mubr.f32.mxu0 %v1526
        %1786 = vmatmul.mubr.f32.gmra.mrb[0].mxu0 %v1525
        %v1787 = vpop.f32.mrb[0].mxu0
        %v1788 = vadd.f32 %v1564, %v1787
        %v1789 = vpop.f32.mrb[0].mxu0
        %1790 = vdwg.mxu0
        %vm1791 = vcmask 7168
        %1792 = vst.msk [vmem:[%s275] sm:$0xff] %vm1791, %v1633
        %1793 = vst.msk [vmem:[%s275 + $0x8] sm:$0xff] %vm1791, %v1638
        %1794 = vst.msk [vmem:[%s275 + $0x10] sm:$0xff] %vm1791, %v1643
        %1795 = vst.msk [vmem:[%s275 + $0x18] sm:$0xff] %vm1791, %v1648
        %1796 = vst.msk [vmem:[%s275 + $0x20] sm:$0xff] %vm1791, %v1653
        %1797 = vst.msk [vmem:[%s275 + $0x28] sm:$0xff] %vm1791, %v1658
        %1798 = vst.msk [vmem:[%s275 + $0x30] sm:$0xff] %vm1791, %v1663
        %1799 = vst.msk [vmem:[%s275 + $0x38] sm:$0xff] %vm1791, %v1668
        %1800 = vst.msk [vmem:[%s275 + $0x40] sm:$0xff] %vm1791, %v1673
        %1801 = vst.msk [vmem:[%s275 + $0x48] sm:$0xff] %vm1791, %v1678
        %1802 = vst.msk [vmem:[%s275 + $0x50] sm:$0xff] %vm1791, %v1683
        %1803 = vst.msk [vmem:[%s275 + $0x58] sm:$0xff] %vm1791, %v1688
        %1804 = vst.msk [vmem:[%s275 + $0x60] sm:$0xff] %vm1791, %v1693
        %1805 = vst.msk [vmem:[%s275 + $0x68] sm:$0xff] %vm1791, %v1698
        %1806 = vst.msk [vmem:[%s275 + $0x70] sm:$0xff] %vm1791, %v1703
        %1807 = vst.msk [vmem:[%s275 + $0x78] sm:$0xff] %vm1791, %v1708
        %1808 = vst.msk [vmem:[%s275 + $0x80] sm:$0xff] %vm1791, %v1713
        %1809 = vst.msk [vmem:[%s275 + $0x88] sm:$0xff] %vm1791, %v1718
        %1810 = vst.msk [vmem:[%s275 + $0x90] sm:$0xff] %vm1791, %v1723
        %1811 = vst.msk [vmem:[%s275 + $0x98] sm:$0xff] %vm1791, %v1728
        %1812 = vst.msk [vmem:[%s275 + $0xa0] sm:$0xff] %vm1791, %v1733
        %1813 = vst.msk [vmem:[%s275 + $0xa8] sm:$0xff] %vm1791, %v1738
        %1814 = vst.msk [vmem:[%s275 + $0xb0] sm:$0xff] %vm1791, %v1743
        %1815 = vst.msk [vmem:[%s275 + $0xb8] sm:$0xff] %vm1791, %v1748
        %1816 = vst.msk [vmem:[%s275 + $0xc0] sm:$0xff] %vm1791, %v1753
        %1817 = vst.msk [vmem:[%s275 + $0xc8] sm:$0xff] %vm1791, %v1758
        %1818 = vst.msk [vmem:[%s275 + $0xd0] sm:$0xff] %vm1791, %v1763
        %1819 = vst.msk [vmem:[%s275 + $0xd8] sm:$0xff] %vm1791, %v1768
        %1820 = vst.msk [vmem:[%s275 + $0xe0] sm:$0xff] %vm1791, %v1773
        %1821 = vst.msk [vmem:[%s275 + $0xe8] sm:$0xff] %vm1791, %v1778
        %1822 = vst.msk [vmem:[%s275 + $0xf0] sm:$0xff] %vm1791, %v1783
        %1823 = vst.msk [vmem:[%s275 + $0xf8] sm:$0xff] %vm1791, %v1788
        %s1824 = sand.u32 %s138, 1
        %s1825 = sand.u32 %s138, 1
        %s1826 = smul.addr %s1825, 256
        %s1827 = scalar_lea.vmem [#allocation7], %s1826
        // Predicated region
        $region53: #{tpu_custom_call.1} parent=39 // pred_check
          %p1828 = pneg %p148
        $region54: #{tpu_custom_call.1} parent=39 // pred_check_branch
          %1830 = sbr.rel (%p1828) target = $region56
        $region55: #{tpu_custom_call.1} parent=39 // pred_region
          %s1831 = smul.u32 32, %s20
          %s1832 = ssub.s32 125, %s1831
          %p1833 = scmp.lt.s32.totalorder %s1832, 32
          %s1834 = scalar_select %p1833, %s1832, 32
          %s1835 = smul.u32 128, %s1834
          %p1836 = scmp.ne.s32.totalorder 0, %s1835
          %s1837 = smul.addr %s1831, 8
          %s1838 = scalar_lea.vmem %s5, %s1837
          // Predicated region
          $region57: #{tpu_custom_call.1} parent=55 // pred_check
            %p1839 = pneg %p1836
          $region58: #{tpu_custom_call.1} parent=55 // pred_check_branch
            %1841 = sbr.rel (%p1839) target = $region60
          $region59: #{tpu_custom_call.1} parent=55 // pred_region
            // Predicated region
            $region61: #{tpu_custom_call.1} parent=59 // pred_check
              _
            $region62: #{tpu_custom_call.1} parent=59 // pred_check_branch
              %1843 = sbr.rel (0) target = $region64
            $region63: #{tpu_custom_call.1} parent=59 // pred_region
              // Predicated region
              $region83: #{tpu_custom_call.1} parent=63 // pred_check
                _
              $region84: #{tpu_custom_call.1} parent=63 // pred_check_branch
                %1954 = sbr.rel (0) target = $region86
              $region85: #{tpu_custom_call.1} parent=63 // pred_region
                %s1955 = sshrl.u32 %s1834, 5
                // While loop
                $region87: #{tpu_custom_call.1} parent=85 // loop_pre_header
                  _
                $region88: #{tpu_custom_call.1} parent=85 // loop_header
                  %s1957 = sphi 0, %s1959
                  %p1958 = scmp.ge.s32.totalorder %s1957, %s1955
                  %s1962 = sphi 0, %s2031
                  %s1963 = sphi %s1827, %s2034
                  %s1964 = sphi %s1838, %s2035
                $region89: #{tpu_custom_call.1} parent=85 // loop_header_branch
                  %1961 = sbr.rel (%p1958) target = $region93
                $region90: #{tpu_custom_call.1} parent=85 // loop_body
                  %v1965 = vld [vmem:[%s1963] sm:$0xff]
                  %1966 = vst [vmem:[%s1964] sm:$0xff] %v1965
                  %v1967 = vld [vmem:[%s1963 + $0x8] sm:$0xff]
                  %1968 = vst [vmem:[%s1964 + $0x8] sm:$0xff] %v1967
                  %v1969 = vld [vmem:[%s1963 + $0x10] sm:$0xff]
                  %1970 = vst [vmem:[%s1964 + $0x10] sm:$0xff] %v1969
                  %v1971 = vld [vmem:[%s1963 + $0x18] sm:$0xff]
                  %1972 = vst [vmem:[%s1964 + $0x18] sm:$0xff] %v1971
                  %v1973 = vld [vmem:[%s1963 + $0x20] sm:$0xff]
                  %1974 = vst [vmem:[%s1964 + $0x20] sm:$0xff] %v1973
                  %v1975 = vld [vmem:[%s1963 + $0x28] sm:$0xff]
                  %1976 = vst [vmem:[%s1964 + $0x28] sm:$0xff] %v1975
                  %v1977 = vld [vmem:[%s1963 + $0x30] sm:$0xff]
                  %1978 = vst [vmem:[%s1964 + $0x30] sm:$0xff] %v1977
                  %v1979 = vld [vmem:[%s1963 + $0x38] sm:$0xff]
                  %1980 = vst [vmem:[%s1964 + $0x38] sm:$0xff] %v1979
                  %v1981 = vld [vmem:[%s1963 + $0x40] sm:$0xff]
                  %1982 = vst [vmem:[%s1964 + $0x40] sm:$0xff] %v1981
                  %v1983 = vld [vmem:[%s1963 + $0x48] sm:$0xff]
                  %1984 = vst [vmem:[%s1964 + $0x48] sm:$0xff] %v1983
                  %v1985 = vld [vmem:[%s1963 + $0x50] sm:$0xff]
                  %1986 = vst [vmem:[%s1964 + $0x50] sm:$0xff] %v1985
                  %v1987 = vld [vmem:[%s1963 + $0x58] sm:$0xff]
                  %1988 = vst [vmem:[%s1964 + $0x58] sm:$0xff] %v1987
                  %v1989 = vld [vmem:[%s1963 + $0x60] sm:$0xff]
                  %1990 = vst [vmem:[%s1964 + $0x60] sm:$0xff] %v1989
                  %v1991 = vld [vmem:[%s1963 + $0x68] sm:$0xff]
                  %1992 = vst [vmem:[%s1964 + $0x68] sm:$0xff] %v1991
                  %v1993 = vld [vmem:[%s1963 + $0x70] sm:$0xff]
                  %1994 = vst [vmem:[%s1964 + $0x70] sm:$0xff] %v1993
                  %v1995 = vld [vmem:[%s1963 + $0x78] sm:$0xff]
                  %1996 = vst [vmem:[%s1964 + $0x78] sm:$0xff] %v1995
                  %v1997 = vld [vmem:[%s1963 + $0x80] sm:$0xff]
                  %1998 = vst [vmem:[%s1964 + $0x80] sm:$0xff] %v1997
                  %v1999 = vld [vmem:[%s1963 + $0x88] sm:$0xff]
                  %2000 = vst [vmem:[%s1964 + $0x88] sm:$0xff] %v1999
                  %v2001 = vld [vmem:[%s1963 + $0x90] sm:$0xff]
                  %2002 = vst [vmem:[%s1964 + $0x90] sm:$0xff] %v2001
                  %v2003 = vld [vmem:[%s1963 + $0x98] sm:$0xff]
                  %2004 = vst [vmem:[%s1964 + $0x98] sm:$0xff] %v2003
                  %v2005 = vld [vmem:[%s1963 + $0xa0] sm:$0xff]
                  %2006 = vst [vmem:[%s1964 + $0xa0] sm:$0xff] %v2005
                  %v2007 = vld [vmem:[%s1963 + $0xa8] sm:$0xff]
                  %2008 = vst [vmem:[%s1964 + $0xa8] sm:$0xff] %v2007
                  %v2009 = vld [vmem:[%s1963 + $0xb0] sm:$0xff]
                  %2010 = vst [vmem:[%s1964 + $0xb0] sm:$0xff] %v2009
                  %v2011 = vld [vmem:[%s1963 + $0xb8] sm:$0xff]
                  %2012 = vst [vmem:[%s1964 + $0xb8] sm:$0xff] %v2011
                  %v2013 = vld [vmem:[%s1963 + $0xc0] sm:$0xff]
                  %2014 = vst [vmem:[%s1964 + $0xc0] sm:$0xff] %v2013
                  %v2015 = vld [vmem:[%s1963 + $0xc8] sm:$0xff]
                  %2016 = vst [vmem:[%s1964 + $0xc8] sm:$0xff] %v2015
                  %v2017 = vld [vmem:[%s1963 + $0xd0] sm:$0xff]
                  %2018 = vst [vmem:[%s1964 + $0xd0] sm:$0xff] %v2017
                  %v2019 = vld [vmem:[%s1963 + $0xd8] sm:$0xff]
                  %2020 = vst [vmem:[%s1964 + $0xd8] sm:$0xff] %v2019
                  %v2021 = vld [vmem:[%s1963 + $0xe0] sm:$0xff]
                  %2022 = vst [vmem:[%s1964 + $0xe0] sm:$0xff] %v2021
                  %v2023 = vld [vmem:[%s1963 + $0xe8] sm:$0xff]
                  %2024 = vst [vmem:[%s1964 + $0xe8] sm:$0xff] %v2023
                  %v2025 = vld [vmem:[%s1963 + $0xf0] sm:$0xff]
                  %2026 = vst [vmem:[%s1964 + $0xf0] sm:$0xff] %v2025
                  %v2027 = vld [vmem:[%s1963 + $0xf8] sm:$0xff]
                  %2028 = vst [vmem:[%s1964 + $0xf8] sm:$0xff] %v2027
                  %s2029 = sadd.s32 1, %s1962
                  %p2030 = scmp.ge.s32.totalorder %s2029, %s1955
                  %s2031 = scalar_select %p2030, 0, %s2029
                  %s2032 = smul.u32 %s2031, 256
                  %s2033 = smul.u32 %s2031, 256
                  %s2034 = scalar_lea.vmem %s1827, %s2032 [#allocation7]
                  %s2035 = scalar_lea.vmem %s1838, %s2033
                $region91: #{tpu_custom_call.1} parent=85 // loop_footer
                  %s1959 = sadd.s32 %s1957, 1
                $region92: #{tpu_custom_call.1} parent=85 // loop_footer_branch
                  %1956 = sbr.rel target = $region88
                $region93: #{tpu_custom_call.1} parent=85 // loop_exit
                  _
                %s2036 = sshrl.u32 %s1834, 5
                %s2037 = sand.u32 %s1834, 31
                %s2038 = smul.u32 %s2036, 32
                %s2039 = smul.u32 8, %s2038
                %s2040 = scalar_lea.vmem %s1827, %s2039 [#allocation7]
                %s2041 = smul.u32 8, %s2038
                %s2042 = scalar_lea.vmem %s1838, %s2041
                // While loop
                $region94: #{tpu_custom_call.1} parent=85 // loop_pre_header
                  _
                $region95: #{tpu_custom_call.1} parent=85 // loop_header
                  %s2044 = sphi 0, %s2046
                  %p2045 = scmp.ge.s32.totalorder %s2044, %s2037
                  %s2049 = sphi 0, %s2056
                  %s2050 = sphi %s2040, %s2059
                  %s2051 = sphi %s2042, %s2060
                $region96: #{tpu_custom_call.1} parent=85 // loop_header_branch
                  %2048 = sbr.rel (%p2045) target = $region100
                $region97: #{tpu_custom_call.1} parent=85 // loop_body
                  %v2052 = vld [vmem:[%s2050] sm:$0xff]
                  %2053 = vst [vmem:[%s2051] sm:$0xff] %v2052
                  %s2054 = sadd.s32 1, %s2049
                  %p2055 = scmp.ge.s32.totalorder %s2054, %s2037
                  %s2056 = scalar_select %p2055, 0, %s2054
                  %s2057 = smul.u32 %s2056, 8
                  %s2058 = smul.u32 %s2056, 8
                  %s2059 = scalar_lea.vmem %s2040, %s2057 [#allocation7]
                  %s2060 = scalar_lea.vmem %s2042, %s2058
                $region98: #{tpu_custom_call.1} parent=85 // loop_footer
                  %s2046 = sadd.s32 %s2044, 1
                $region99: #{tpu_custom_call.1} parent=85 // loop_footer_branch
                  %2043 = sbr.rel target = $region95
                $region100: #{tpu_custom_call.1} parent=85 // loop_exit
                  _
              $region86: #{tpu_custom_call.1} parent=63 // pred_fallthru
                _
              // Predicated region
              $region101: #{tpu_custom_call.1} parent=63 // pred_check
                _
              $region102: #{tpu_custom_call.1} parent=63 // pred_check_branch
                %2062 = sbr.rel target = $region104
              $region103: #{tpu_custom_call.1} parent=63 // pred_region
                _
              $region104: #{tpu_custom_call.1} parent=63 // pred_fallthru
                _
            $region64: #{tpu_custom_call.1} parent=59 // pred_fallthru
              _
            // Predicated region
            $region65: #{tpu_custom_call.1} parent=59 // pred_check
              _
            $region66: #{tpu_custom_call.1} parent=59 // pred_check_branch
              %1845 = sbr.rel target = $region68
            $region67: #{tpu_custom_call.1} parent=59 // pred_region
              %s1847 = sshrl.u32 %s1834, 5
              // While loop
              $region69: #{tpu_custom_call.1} parent=67 // loop_pre_header
                _
              $region70: #{tpu_custom_call.1} parent=67 // loop_header
                %s1849 = sphi 0, %s1851
                %p1850 = scmp.ge.s32.totalorder %s1849, %s1847
                %s1854 = sphi 0, %s1923
                %s1855 = sphi %s1827, %s1926
                %s1856 = sphi %s1838, %s1927
              $region71: #{tpu_custom_call.1} parent=67 // loop_header_branch
                %1853 = sbr.rel (%p1850) target = $region75
              $region72: #{tpu_custom_call.1} parent=67 // loop_body
                %v1857 = vld [vmem:[%s1855] sm:$0xff]
                %1858 = vst [vmem:[%s1856] sm:$0xff] %v1857
                %v1859 = vld [vmem:[%s1855 + $0x8] sm:$0xff]
                %1860 = vst [vmem:[%s1856 + $0x8] sm:$0xff] %v1859
                %v1861 = vld [vmem:[%s1855 + $0x10] sm:$0xff]
                %1862 = vst [vmem:[%s1856 + $0x10] sm:$0xff] %v1861
                %v1863 = vld [vmem:[%s1855 + $0x18] sm:$0xff]
                %1864 = vst [vmem:[%s1856 + $0x18] sm:$0xff] %v1863
                %v1865 = vld [vmem:[%s1855 + $0x20] sm:$0xff]
                %1866 = vst [vmem:[%s1856 + $0x20] sm:$0xff] %v1865
                %v1867 = vld [vmem:[%s1855 + $0x28] sm:$0xff]
                %1868 = vst [vmem:[%s1856 + $0x28] sm:$0xff] %v1867
                %v1869 = vld [vmem:[%s1855 + $0x30] sm:$0xff]
                %1870 = vst [vmem:[%s1856 + $0x30] sm:$0xff] %v1869
                %v1871 = vld [vmem:[%s1855 + $0x38] sm:$0xff]
                %1872 = vst [vmem:[%s1856 + $0x38] sm:$0xff] %v1871
                %v1873 = vld [vmem:[%s1855 + $0x40] sm:$0xff]
                %1874 = vst [vmem:[%s1856 + $0x40] sm:$0xff] %v1873
                %v1875 = vld [vmem:[%s1855 + $0x48] sm:$0xff]
                %1876 = vst [vmem:[%s1856 + $0x48] sm:$0xff] %v1875
                %v1877 = vld [vmem:[%s1855 + $0x50] sm:$0xff]
                %1878 = vst [vmem:[%s1856 + $0x50] sm:$0xff] %v1877
                %v1879 = vld [vmem:[%s1855 + $0x58] sm:$0xff]
                %1880 = vst [vmem:[%s1856 + $0x58] sm:$0xff] %v1879
                %v1881 = vld [vmem:[%s1855 + $0x60] sm:$0xff]
                %1882 = vst [vmem:[%s1856 + $0x60] sm:$0xff] %v1881
                %v1883 = vld [vmem:[%s1855 + $0x68] sm:$0xff]
                %1884 = vst [vmem:[%s1856 + $0x68] sm:$0xff] %v1883
                %v1885 = vld [vmem:[%s1855 + $0x70] sm:$0xff]
                %1886 = vst [vmem:[%s1856 + $0x70] sm:$0xff] %v1885
                %v1887 = vld [vmem:[%s1855 + $0x78] sm:$0xff]
                %1888 = vst [vmem:[%s1856 + $0x78] sm:$0xff] %v1887
                %v1889 = vld [vmem:[%s1855 + $0x80] sm:$0xff]
                %1890 = vst [vmem:[%s1856 + $0x80] sm:$0xff] %v1889
                %v1891 = vld [vmem:[%s1855 + $0x88] sm:$0xff]
                %1892 = vst [vmem:[%s1856 + $0x88] sm:$0xff] %v1891
                %v1893 = vld [vmem:[%s1855 + $0x90] sm:$0xff]
                %1894 = vst [vmem:[%s1856 + $0x90] sm:$0xff] %v1893
                %v1895 = vld [vmem:[%s1855 + $0x98] sm:$0xff]
                %1896 = vst [vmem:[%s1856 + $0x98] sm:$0xff] %v1895
                %v1897 = vld [vmem:[%s1855 + $0xa0] sm:$0xff]
                %1898 = vst [vmem:[%s1856 + $0xa0] sm:$0xff] %v1897
                %v1899 = vld [vmem:[%s1855 + $0xa8] sm:$0xff]
                %1900 = vst [vmem:[%s1856 + $0xa8] sm:$0xff] %v1899
                %v1901 = vld [vmem:[%s1855 + $0xb0] sm:$0xff]
                %1902 = vst [vmem:[%s1856 + $0xb0] sm:$0xff] %v1901
                %v1903 = vld [vmem:[%s1855 + $0xb8] sm:$0xff]
                %1904 = vst [vmem:[%s1856 + $0xb8] sm:$0xff] %v1903
                %v1905 = vld [vmem:[%s1855 + $0xc0] sm:$0xff]
                %1906 = vst [vmem:[%s1856 + $0xc0] sm:$0xff] %v1905
                %v1907 = vld [vmem:[%s1855 + $0xc8] sm:$0xff]
                %1908 = vst [vmem:[%s1856 + $0xc8] sm:$0xff] %v1907
                %v1909 = vld [vmem:[%s1855 + $0xd0] sm:$0xff]
                %1910 = vst [vmem:[%s1856 + $0xd0] sm:$0xff] %v1909
                %v1911 = vld [vmem:[%s1855 + $0xd8] sm:$0xff]
                %1912 = vst [vmem:[%s1856 + $0xd8] sm:$0xff] %v1911
                %v1913 = vld [vmem:[%s1855 + $0xe0] sm:$0xff]
                %1914 = vst [vmem:[%s1856 + $0xe0] sm:$0xff] %v1913
                %v1915 = vld [vmem:[%s1855 + $0xe8] sm:$0xff]
                %1916 = vst [vmem:[%s1856 + $0xe8] sm:$0xff] %v1915
                %v1917 = vld [vmem:[%s1855 + $0xf0] sm:$0xff]
                %1918 = vst [vmem:[%s1856 + $0xf0] sm:$0xff] %v1917
                %v1919 = vld [vmem:[%s1855 + $0xf8] sm:$0xff]
                %1920 = vst [vmem:[%s1856 + $0xf8] sm:$0xff] %v1919
                %s1921 = sadd.s32 1, %s1854
                %p1922 = scmp.ge.s32.totalorder %s1921, %s1847
                %s1923 = scalar_select %p1922, 0, %s1921
                %s1924 = smul.u32 %s1923, 256
                %s1925 = smul.u32 %s1923, 256
                %s1926 = scalar_lea.vmem %s1827, %s1924 [#allocation7]
                %s1927 = scalar_lea.vmem %s1838, %s1925
              $region73: #{tpu_custom_call.1} parent=67 // loop_footer
                %s1851 = sadd.s32 %s1849, 1
              $region74: #{tpu_custom_call.1} parent=67 // loop_footer_branch
                %1848 = sbr.rel target = $region70
              $region75: #{tpu_custom_call.1} parent=67 // loop_exit
                _
              %s1928 = sshrl.u32 %s1834, 5
              %s1929 = sand.u32 %s1834, 31
              %s1930 = smul.u32 %s1928, 32
              %s1931 = smul.u32 8, %s1930
              %s1932 = scalar_lea.vmem %s1827, %s1931 [#allocation7]
              %s1933 = smul.u32 8, %s1930
              %s1934 = scalar_lea.vmem %s1838, %s1933
              // While loop
              $region76: #{tpu_custom_call.1} parent=67 // loop_pre_header
                _
              $region77: #{tpu_custom_call.1} parent=67 // loop_header
                %s1936 = sphi 0, %s1938
                %p1937 = scmp.ge.s32.totalorder %s1936, %s1929
                %s1941 = sphi 0, %s1948
                %s1942 = sphi %s1932, %s1951
                %s1943 = sphi %s1934, %s1952
              $region78: #{tpu_custom_call.1} parent=67 // loop_header_branch
                %1940 = sbr.rel (%p1937) target = $region82
              $region79: #{tpu_custom_call.1} parent=67 // loop_body
                %v1944 = vld [vmem:[%s1942] sm:$0xff]
                %1945 = vst [vmem:[%s1943] sm:$0xff] %v1944
                %s1946 = sadd.s32 1, %s1941
                %p1947 = scmp.ge.s32.totalorder %s1946, %s1929
                %s1948 = scalar_select %p1947, 0, %s1946
                %s1949 = smul.u32 %s1948, 8
                %s1950 = smul.u32 %s1948, 8
                %s1951 = scalar_lea.vmem %s1932, %s1949 [#allocation7]
                %s1952 = scalar_lea.vmem %s1934, %s1950
              $region80: #{tpu_custom_call.1} parent=67 // loop_footer
                %s1938 = sadd.s32 %s1936, 1
              $region81: #{tpu_custom_call.1} parent=67 // loop_footer_branch
                %1935 = sbr.rel target = $region77
              $region82: #{tpu_custom_call.1} parent=67 // loop_exit
                _
            $region68: #{tpu_custom_call.1} parent=59 // pred_fallthru
              _
          $region60: #{tpu_custom_call.1} parent=55 // pred_fallthru
            _
          %2063 = vnop
        $region56: #{tpu_custom_call.1} parent=39 // pred_fallthru
          _
      $region40: #{tpu_custom_call.1} parent=5 // pred_fallthru
        _
      %p2064 = scmp.le.s32.totalorder 2, %s15
      // Predicated region
      $region105: #{tpu_custom_call.1} parent=5 // pred_check
        %p2065 = pneg %p2064
      $region106: #{tpu_custom_call.1} parent=5 // pred_check_branch
        %2067 = sbr.rel (%p2065) target = $region108
      $region107: #{tpu_custom_call.1} parent=5 // pred_region
        %s2068 = ssub.s32 %s15, 2
        // Predicated region
        $region109: #{tpu_custom_call.1} parent=107 // pred_check
          %p2069 = pneg %p154
        $region110: #{tpu_custom_call.1} parent=107 // pred_check_branch
          %2071 = sbr.rel (%p2069) target = $region112
        $region111: #{tpu_custom_call.1} parent=107 // pred_region
          %s2072 = sand.u32 %s139, 1
          %s2073 = sand.u32 %s139, 1
          %s2074 = smul.addr %s2073, 256
          %s2075 = scalar_lea.vmem [#allocation7], %s2074
        $region112: #{tpu_custom_call.1} parent=107 // pred_fallthru
          _
      $region108: #{tpu_custom_call.1} parent=5 // pred_fallthru
        _
    $region6: #{tpu_custom_call.1} parent=1 // loop_footer
      %s19 = sadd.s32 1, %s15
    $region7: #{tpu_custom_call.1} parent=1 // loop_footer_branch
      %14 = sbr.rel target = $region3
    $region8: #{tpu_custom_call.1} parent=1 // loop_exit
      _
    %2076 = vsyncpa [#allocation3], 1
    %s2077 = scalar_lea.sflag [#allocation3], 1
    %2078 = vsyncpa %s2077, 1
    %2079 = vsyncpa [#allocation5], 1

</llo_original>
